<compile_context>
chip_gen: v7x
topology: tpu7x:2x2x1
jax: 0.10.0
libtpu: 0.0.40
codegen_flags: <defaults>
</compile_context>

<pallas_src>
import math
import functools

import jax
import jax.numpy as jnp
from jax import lax
from jax.experimental import pallas as pl
from jax.experimental.pallas import tpu as pltpu


def _gelu(x):
    # matches the module-level gelu() (tanh approximation)
    return 0.5 * x * (1.0 + jnp.tanh(math.sqrt(2.0 / math.pi) * (x + 0.044715 * x ** 3)))


def _layernorm(h, w, b, eps):
    # TF-style layernorm (epsilon inside the sqrt), exactly as the LayerNorm module
    u = jnp.mean(h, axis=-1, keepdims=True)
    s = jnp.mean((h - u) ** 2, axis=-1, keepdims=True)
    return w * ((h - u) / jnp.sqrt(s + eps)) + b


def _pick_tq(T):
    if T <= 256:
        return T
    for cand in (256, 128, 64, 32, 16, 8):
        if T % cand == 0:
            return cand
    return T  # fallback: no sequence tiling


def block_kernel(x_ref,
                 ln1_w_ref, ln1_b_ref,
                 wq_ref, wk_ref, wv_ref,
                 bq_ref, bk_ref, bv_ref,
                 wo_ref, bo_ref,
                 ln2_w_ref, ln2_b_ref,
                 wfc_ref, bfc_ref,
                 wp_ref, bp_ref,
                 out_ref, key_ref, val_ref,
                 k_scr, v_scr,
                 *, n_head, scale, eps, tq):
    qi = pl.program_id(1)
    T = x_ref.shape[1]
    C = x_ref.shape[2]
    H = n_head
    D = C // H
    cd = wq_ref.dtype          # MXU operand dtype (bf16 in perf mode, f32 in exact mode)

    # ---- once per batch element: K/V for the whole sequence, cached head-major in VMEM ----
    @pl.when(qi == 0)
    def _():
        xf = x_ref[0]                                                       # [T, C] f32
        hf = _layernorm(xf, ln1_w_ref[...], ln1_b_ref[...], eps)
        hc = hf.astype(cd)
        k = jnp.dot(hc, wk_ref[...], preferred_element_type=jnp.float32) + bk_ref[...]
        v = jnp.dot(hc, wv_ref[...], preferred_element_type=jnp.float32) + bv_ref[...]
        # lane-dense "present" outputs (full-width stores); head split happens outside.
        key_ref[0] = k.astype(key_ref.dtype)
        val_ref[0] = v.astype(val_ref.dtype)
        kc = k.astype(cd)
        vc = v.astype(cd)
        # head-major cache for the batched attention contractions (done once per batch elem)
        k_scr[...] = jnp.stack([kc[:, h * D:(h + 1) * D] for h in range(H)], axis=0)
        v_scr[...] = jnp.stack([vc[:, h * D:(h + 1) * D] for h in range(H)], axis=0)

    # ---- query tile ----
    r0 = qi * tq
    if tq % 8 == 0:
        r0 = pl.multiple_of(r0, 8)
    xt = x_ref[0, pl.ds(r0, tq), :]                                         # [tq, C] f32
    ht = _layernorm(xt, ln1_w_ref[...], ln1_b_ref[...], eps)
    q = jnp.dot(ht.astype(cd), wq_ref[...], preferred_element_type=jnp.float32) + bq_ref[...]
    qc = q.astype(cd)
    q3 = jnp.stack([qc[:, h * D:(h + 1) * D] for h in range(H)], axis=0)    # [H, tq, D]

    # scores for all heads in one batched contraction
    s = jnp.einsum('hqd,hkd->hqk', q3, k_scr[...],
                   preferred_element_type=jnp.float32)                      # [H, tq, T]
    if scale:
        s = s * (1.0 / math.sqrt(D))
    # causal mask: identical to w*b - 1e10*(1-b) for b in {0,1}
    row = r0 + lax.broadcasted_iota(jnp.int32, (H, tq, T), 1)
    col = lax.broadcasted_iota(jnp.int32, (H, tq, T), 2)
    s = jnp.where(row >= col, s, -1e10)

    m = jnp.max(s, axis=-1, keepdims=True)
    e = jnp.exp(s - m)
    p = e * pl.reciprocal(jnp.sum(e, axis=-1, keepdims=True), approx=True)  # softmax (f32)

    ctx = jnp.einsum('hqk,hkd->hqd', p.astype(cd), v_scr[...],
                     preferred_element_type=jnp.float32)                    # [H, tq, D]
    # merge_heads: build the [tq, C] value in registers (no masked scratch stores)
    a = jnp.concatenate([ctx[h] for h in range(H)], axis=-1)                # [tq, C] f32

    # ---- attention output projection (c_proj) + first residual ----
    a = jnp.dot(a.astype(cd), wo_ref[...], preferred_element_type=jnp.float32) + bo_ref[...]
    x2 = xt + a

    # ---- ln_2 + MLP + second residual ----
    h2 = _layernorm(x2, ln2_w_ref[...], ln2_b_ref[...], eps)
    fc = jnp.dot(h2.astype(cd), wfc_ref[...], preferred_element_type=jnp.float32) + bfc_ref[...]
    fc = _gelu(fc)
    m2 = jnp.dot(fc.astype(cd), wp_ref[...], preferred_element_type=jnp.float32) + bp_ref[...]

    out_ref[0] = (x2 + m2).astype(out_ref.dtype)


def gpt2_block(x, params, *, n_head, lora_scaling, scale=True, eps=1e-5,
               compute_dtype=jnp.bfloat16, tq=None):
    B, T, C = x.shape
    D = C // n_head
    f32 = jnp.float32
    cd = compute_dtype

    w = params["c_attn_w"].astype(f32)           # [C, 3C] (Conv1D weight)
    bias = params["c_attn_b"].astype(f32)        # [3C]
    Wq_raw, Wk_raw, Wv_raw = w[:, :C], w[:, C:2 * C], w[:, 2 * C:]
    bq, bk, bv = bias[:C], bias[C:2 * C], bias[2 * C:]

    # ---- fold LoRA into Q/V weights (parameter setup -> plain JAX glue, f32) ----
    # PyTorch: adapted_W = W.t() + scaling * (B @ (A @ W.t())); y = F.linear(x, adapted_W)
    Wq_lin = Wq_raw.T
    Wv_lin = Wv_raw.T
    adapted_Wq = Wq_lin + lora_scaling * (params["lora_B_q"].astype(f32) @
                                          (params["lora_A_q"].astype(f32) @ Wq_lin))
    adapted_Wv = Wv_lin + lora_scaling * (params["lora_B_v"].astype(f32) @
                                          (params["lora_A_v"].astype(f32) @ Wv_lin))
    Wq_eff = adapted_Wq.T.astype(cd)             # x @ Wq_eff == F.linear(x, adapted_W_q)
    Wk_eff = Wk_raw.astype(cd)
    Wv_eff = adapted_Wv.T.astype(cd)

    def row(v):                                  # 1-D params as [1, N] (lane-major), f32
        return v.reshape(1, -1).astype(f32)

    inputs = [
        x.astype(f32),
        row(params["ln1_w"]), row(params["ln1_b"]),
        Wq_eff, Wk_eff, Wv_eff,
        row(bq), row(bk), row(bv),
        params["c_proj_attn_w"].astype(cd), row(params["c_proj_attn_b"]),
        row(params["ln2_w"]), row(params["ln2_b"]),
        params["c_fc_w"].astype(cd), row(params["c_fc_b"]),
        params["c_mlp_proj_w"].astype(cd), row(params["c_mlp_proj_b"]),
    ]

    if tq is None:
        tq = _pick_tq(T)
    nq = T // tq

    def bspec(a):                                # whole array, same block every grid step
        n = a.ndim
        return pl.BlockSpec(a.shape, lambda b, q, n=n: (0,) * n)

    in_specs = [pl.BlockSpec((1, T, C), lambda b, q: (b, 0, 0))]
    in_specs += [bspec(a) for a in inputs[1:]]

    out_shapes = (
        jax.ShapeDtypeStruct((B, T, C), f32),    # block output
        jax.ShapeDtypeStruct((B, T, C), f32),    # key  (lane-dense; head split outside)
        jax.ShapeDtypeStruct((B, T, C), f32),    # value
    )
    out_specs = [
        pl.BlockSpec((1, tq, C), lambda b, q: (b, q, 0)),
        pl.BlockSpec((1, T, C), lambda b, q: (b, 0, 0)),
        pl.BlockSpec((1, T, C), lambda b, q: (b, 0, 0)),
    ]

    # advisory cost estimate for the XLA scheduler
    flops = (2 * B * T * C * 3 * C            # qkv projections
             + 4 * B * n_head * T * T * D     # qk^T + pv
             + 2 * B * T * C * C              # attention output projection
             + 2 * B * T * C * 4 * C * 2)     # MLP
    transcendentals = B * T * 4 * C + B * n_head * T * T
    bytes_accessed = sum(int(a.size) * a.dtype.itemsize for a in inputs) + 3 * B * T * C * 4
    cost = pl.CostEstimate(flops=int(flops), transcendentals=int(transcendentals),
                           bytes_accessed=int(bytes_accessed))

    kern = functools.partial(block_kernel, n_head=n_head, scale=scale, eps=eps, tq=tq)
    out, key_flat, val_flat = pl.pallas_call(
        kern,
        out_shape=out_shapes,
        grid_spec=pltpu.PrefetchScalarGridSpec(
            num_scalar_prefetch=0,
            grid=(B, nq),
            in_specs=in_specs,
            out_specs=out_specs,
            scratch_shapes=[pltpu.VMEM((n_head, T, D), cd),   # K cache, head-major
                            pltpu.VMEM((n_head, T, D), cd)],  # V cache, head-major
        ),
        compiler_params=pltpu.CompilerParams(
            dimension_semantics=("parallel", "arbitrary"),
            vmem_limit_bytes=64 * 1024 * 1024,
        ),
        cost_estimate=cost,
    )(*inputs)

    # present = torch.stack((key.transpose(-2,-1), value)) -> [2, B, H, T, D]
    key_t = key_flat.reshape(B, T, n_head, D).transpose(0, 2, 1, 3)
    val_t = val_flat.reshape(B, T, n_head, D).transpose(0, 2, 1, 3)
    present = jnp.stack([key_t, val_t])
    return out, present


def reference_block(x, params, *, n_head, lora_scaling, scale, eps):
    """Pure-JAX mirror of the PyTorch Block.forward (layer_past=None)."""
    hp = lax.Precision.HIGHEST
    B, T, C = x.shape
    D = C // n_head
    w = params["c_attn_w"]
    bias = params["c_attn_b"]
    Wq = w[:, :C].T
    Wk = w[:, C:2 * C].T
    Wv = w[:, 2 * C:].T
    bq, bk, bv = bias[:C], bias[C:2 * C], bias[2 * C:]
    aWq = Wq + lora_scaling * (params["lora_B_q"] @ (params["lora_A_q"] @ Wq))
    aWv = Wv + lora_scaling * (params["lora_B_v"] @ (params["lora_A_v"] @ Wv))

    def ln(h, wln, bln):
        u = h.mean(-1, keepdims=True)
        s = ((h - u) ** 2).mean(-1, keepdims=True)
        return wln * ((h - u) / jnp.sqrt(s + eps)) + bln

    h = ln(x, params["ln1_w"], params["ln1_b"])
    q = jnp.einsum("btc,oc->bto", h, aWq, precision=hp) + bq
    k = jnp.einsum("btc,oc->bto", h, Wk, precision=hp) + bk
    v = jnp.einsum("btc,oc->bto", h, aWv, precision=hp) + bv
    qh = q.reshape(B, T, n_head, D).transpose(0, 2, 1, 3)
    kh = k.reshape(B, T, n_head, D).transpose(0, 2, 3, 1)   # split_heads(k=True)
    vh = v.reshape(B, T, n_head, D).transpose(0, 2, 1, 3)
    att = jnp.einsum("bhtd,bhds->bhts", qh, kh, precision=hp)
    if scale:
        att = att / math.sqrt(D)
    mask = jnp.tril(jnp.ones((T, T), jnp.float32))[None, None]
    att = att * mask - 1e10 * (1 - mask)
    att = jax.nn.softmax(att, axis=-1)
    a = jnp.einsum("bhts,bhsd->bhtd", att, vh, precision=hp)
    present = jnp.stack([kh.transpose(0, 1, 3, 2), vh])
    a = a.transpose(0, 2, 1, 3).reshape(B, T, C)
    a = jnp.einsum("btc,cd->btd", a, params["c_proj_attn_w"], precision=hp) + params["c_proj_attn_b"]
    x2 = x + a
    h2 = ln(x2, params["ln2_w"], params["ln2_b"])
    fc = jnp.einsum("btc,cd->btd", h2, params["c_fc_w"], precision=hp) + params["c_fc_b"]
    fc = 0.5 * fc * (1 + jnp.tanh(math.sqrt(2 / math.pi) * (fc + 0.044715 * fc ** 3)))
    m = jnp.einsum("btc,cd->btd", fc, params["c_mlp_proj_w"], precision=hp) + params["c_mlp_proj_b"]
    return x2 + m, present


if __name__ == "__main__":
    # small config: n_embd=32, n_head=4, n_ctx=seq=8, lora_attn_dim=4, lora_attn_alpha=32
    B, T, C, H, R = 2, 8, 32, 4, 4
    lora_scaling = 32.0 / R

    key = jax.random.PRNGKey(0)
    ks = jax.random.split(key, 18)
    f32 = jnp.float32

    x = jax.random.normal(ks[0], (B, T, C), f32)
    params = dict(
        c_attn_w=0.02 * jax.random.normal(ks[1], (C, 3 * C), f32),
        c_attn_b=0.02 * jax.random.normal(ks[2], (3 * C,), f32),
        lora_A_q=0.10 * jax.random.normal(ks[3], (R, C), f32),
        lora_B_q=0.10 * jax.random.normal(ks[4], (C, R), f32),
        lora_A_v=0.10 * jax.random.normal(ks[5], (R, C), f32),
        lora_B_v=0.10 * jax.random.normal(ks[6], (C, R), f32),
        c_proj_attn_w=0.02 * jax.random.normal(ks[7], (C, C), f32),
        c_proj_attn_b=0.02 * jax.random.normal(ks[8], (C,), f32),
        ln1_w=1.0 + 0.1 * jax.random.normal(ks[9], (C,), f32),
        ln1_b=0.1 * jax.random.normal(ks[10], (C,), f32),
        ln2_w=1.0 + 0.1 * jax.random.normal(ks[11], (C,), f32),
        ln2_b=0.1 * jax.random.normal(ks[12], (C,), f32),
        c_fc_w=0.02 * jax.random.normal(ks[13], (C, 4 * C), f32),
        c_fc_b=0.02 * jax.random.normal(ks[14], (4 * C,), f32),
        c_mlp_proj_w=0.02 * jax.random.normal(ks[15], (4 * C, C), f32),
        c_mlp_proj_b=0.02 * jax.random.normal(ks[16], (C,), f32),
    )

    ref_out, ref_present = reference_block(x, params, n_head=H,
                                           lora_scaling=lora_scaling,
                                           scale=True, eps=1e-5)

    # exact-mode (f32 MXU operands): tight check against the f32 reference
    out, present = gpt2_block(x, params, n_head=H, lora_scaling=lora_scaling,
                              scale=True, eps=1e-5, compute_dtype=jnp.float32)
    jax.block_until_ready((out, present))
    assert out.shape == (B, T, C) and present.shape == (2, B, H, T, C // H)
    assert jnp.allclose(out, ref_out, atol=1e-3, rtol=1e-3), "block output mismatch (f32)"
    assert jnp.allclose(present, ref_present, atol=1e-3, rtol=1e-3), "present mismatch (f32)"

    # perf-mode (bf16 weights / MXU operands, f32 accumulate + LN + softmax): looser check
    out_bf, present_bf = gpt2_block(x, params, n_head=H, lora_scaling=lora_scaling,
                                    scale=True, eps=1e-5, compute_dtype=jnp.bfloat16)
    jax.block_until_ready((out_bf, present_bf))
    assert jnp.allclose(out_bf, ref_out, atol=5e-2, rtol=5e-2), "block output mismatch (bf16)"
    assert jnp.allclose(present_bf, ref_present, atol=5e-2, rtol=5e-2), "present mismatch (bf16)"

    print("KERNEL_OK")
</pallas_src>

<mosaic_0001>
module attributes {stable_mosaic.version = 11 : i64} {
  func.func @block_kernel(%arg0: i32, %arg1: i32, %arg2: memref<1x8x32xf32, #tpu.memory_space<vmem>>, %arg3: memref<1x32xf32, #tpu.memory_space<vmem>>, %arg4: memref<1x32xf32, #tpu.memory_space<vmem>>, %arg5: memref<32x32xf32, #tpu.memory_space<vmem>>, %arg6: memref<32x32xf32, #tpu.memory_space<vmem>>, %arg7: memref<32x32xf32, #tpu.memory_space<vmem>>, %arg8: memref<1x32xf32, #tpu.memory_space<vmem>>, %arg9: memref<1x32xf32, #tpu.memory_space<vmem>>, %arg10: memref<1x32xf32, #tpu.memory_space<vmem>>, %arg11: memref<32x32xf32, #tpu.memory_space<vmem>>, %arg12: memref<1x32xf32, #tpu.memory_space<vmem>>, %arg13: memref<1x32xf32, #tpu.memory_space<vmem>>, %arg14: memref<1x32xf32, #tpu.memory_space<vmem>>, %arg15: memref<32x128xf32, #tpu.memory_space<vmem>>, %arg16: memref<1x128xf32, #tpu.memory_space<vmem>>, %arg17: memref<128x32xf32, #tpu.memory_space<vmem>>, %arg18: memref<1x32xf32, #tpu.memory_space<vmem>>, %arg19: memref<1x8x32xf32, #tpu.memory_space<vmem>>, %arg20: memref<1x8x32xf32, #tpu.memory_space<vmem>>, %arg21: memref<1x8x32xf32, #tpu.memory_space<vmem>>, %arg22: memref<4x8x8xf32, #tpu.memory_space<vmem>>, %arg23: memref<4x8x8xf32, #tpu.memory_space<vmem>>) attributes {dimension_semantics = [#tpu.dimension_semantics<parallel>, #tpu.dimension_semantics<arbitrary>], iteration_bounds = array<i64: 2, 1>, scalar_prefetch = 0 : i64, scratch_operands = 2 : i64, tpu.core_type = #tpu.core_type<tc>, window_params = [{transform_indices = @transform_0, window_bounds = array<i64: 1, 8, 32>}, {pipeline_mode = #tpu.pipeline_mode<synchronous>, transform_indices = @transform_1, window_bounds = array<i64: 1, 32>}, {pipeline_mode = #tpu.pipeline_mode<synchronous>, transform_indices = @transform_2, window_bounds = array<i64: 1, 32>}, {pipeline_mode = #tpu.pipeline_mode<synchronous>, transform_indices = @transform_3, window_bounds = array<i64: 32, 32>}, {pipeline_mode = #tpu.pipeline_mode<synchronous>, transform_indices = @transform_4, window_bounds = array<i64: 32, 32>}, {pipeline_mode = #tpu.pipeline_mode<synchronous>, transform_indices = @transform_5, window_bounds = array<i64: 32, 32>}, {pipeline_mode = #tpu.pipeline_mode<synchronous>, transform_indices = @transform_6, window_bounds = array<i64: 1, 32>}, {pipeline_mode = #tpu.pipeline_mode<synchronous>, transform_indices = @transform_7, window_bounds = array<i64: 1, 32>}, {pipeline_mode = #tpu.pipeline_mode<synchronous>, transform_indices = @transform_8, window_bounds = array<i64: 1, 32>}, {pipeline_mode = #tpu.pipeline_mode<synchronous>, transform_indices = @transform_9, window_bounds = array<i64: 32, 32>}, {pipeline_mode = #tpu.pipeline_mode<synchronous>, transform_indices = @transform_10, window_bounds = array<i64: 1, 32>}, {pipeline_mode = #tpu.pipeline_mode<synchronous>, transform_indices = @transform_11, window_bounds = array<i64: 1, 32>}, {pipeline_mode = #tpu.pipeline_mode<synchronous>, transform_indices = @transform_12, window_bounds = array<i64: 1, 32>}, {pipeline_mode = #tpu.pipeline_mode<synchronous>, transform_indices = @transform_13, window_bounds = array<i64: 32, 128>}, {pipeline_mode = #tpu.pipeline_mode<synchronous>, transform_indices = @transform_14, window_bounds = array<i64: 1, 128>}, {pipeline_mode = #tpu.pipeline_mode<synchronous>, transform_indices = @transform_15, window_bounds = array<i64: 128, 32>}, {pipeline_mode = #tpu.pipeline_mode<synchronous>, transform_indices = @transform_16, window_bounds = array<i64: 1, 32>}, {transform_indices = @transform_17, window_bounds = array<i64: 1, 8, 32>}, {transform_indices = @transform_18, window_bounds = array<i64: 1, 8, 32>}, {transform_indices = @transform_19, window_bounds = array<i64: 1, 8, 32>}]} {
    %c0_i32 = arith.constant 0 : i32
    %0 = arith.cmpi eq, %arg1, %c0_i32 : i32
    %1 = arith.extui %0 : i1 to i32
    %c0_i32_0 = arith.constant 0 : i32
    %2 = arith.cmpi ne, %1, %c0_i32_0 : i32
    scf.if %2 {
      %c0_58 = arith.constant 0 : index
      %c0_59 = arith.constant 0 : index
      %c0_60 = arith.constant 0 : index
      %135 = vector.load %arg2[%c0_58, %c0_59, %c0_60] : memref<1x8x32xf32, #tpu.memory_space<vmem>>, vector<1x8x32xf32>
      %136 = vector.shape_cast %135 : vector<1x8x32xf32> to vector<8x32xf32>
      %c0_61 = arith.constant 0 : index
      %c0_62 = arith.constant 0 : index
      %137 = vector.load %arg3[%c0_61, %c0_62] : memref<1x32xf32, #tpu.memory_space<vmem>>, vector<1x32xf32>
      %c0_63 = arith.constant 0 : index
      %c0_64 = arith.constant 0 : index
      %138 = vector.load %arg4[%c0_63, %c0_64] : memref<1x32xf32, #tpu.memory_space<vmem>>, vector<1x32xf32>
      %cst_65 = arith.constant dense<0.000000e+00> : vector<8xf32>
      %139 = vector.multi_reduction <add>, %136, %cst_65 [1] : vector<8x32xf32> to vector<8xf32>
      %140 = vector.shape_cast %139 : vector<8xf32> to vector<8x1xf32>
      %cst_66 = arith.constant 3.200000e+01 : f32
      %141 = vector.broadcast %cst_66 : f32 to vector<8x1xf32>
      %142 = arith.divf %140, %141 : vector<8x1xf32>
      %143 = vector.broadcast %142 : vector<8x1xf32> to vector<8x32xf32>
      %144 = arith.subf %136, %143 : vector<8x32xf32>
      %145 = arith.mulf %144, %144 : vector<8x32xf32>
      %cst_67 = arith.constant dense<0.000000e+00> : vector<8xf32>
      %146 = vector.multi_reduction <add>, %145, %cst_67 [1] : vector<8x32xf32> to vector<8xf32>
      %147 = vector.shape_cast %146 : vector<8xf32> to vector<8x1xf32>
      %cst_68 = arith.constant 3.200000e+01 : f32
      %148 = vector.broadcast %cst_68 : f32 to vector<8x1xf32>
      %149 = arith.divf %147, %148 : vector<8x1xf32>
      %150 = vector.broadcast %142 : vector<8x1xf32> to vector<8x32xf32>
      %151 = arith.subf %136, %150 : vector<8x32xf32>
      %cst_69 = arith.constant 9.99999974E-6 : f32
      %152 = vector.broadcast %cst_69 : f32 to vector<8x1xf32>
      %153 = arith.addf %149, %152 : vector<8x1xf32>
      %154 = math.sqrt %153 : vector<8x1xf32>
      %155 = vector.broadcast %154 : vector<8x1xf32> to vector<8x32xf32>
      %156 = arith.divf %151, %155 : vector<8x32xf32>
      %157 = vector.broadcast %137 : vector<1x32xf32> to vector<8x32xf32>
      %158 = arith.mulf %157, %156 : vector<8x32xf32>
      %159 = vector.broadcast %138 : vector<1x32xf32> to vector<8x32xf32>
      %160 = arith.addf %158, %159 : vector<8x32xf32>
      %c0_70 = arith.constant 0 : index
      %c0_71 = arith.constant 0 : index
      %161 = vector.load %arg6[%c0_70, %c0_71] : memref<32x32xf32, #tpu.memory_space<vmem>>, vector<32x32xf32>
      %cst_72 = arith.constant dense<0.000000e+00> : vector<8x32xf32>
      %162 = tpu.matmul %160, %161, %cst_72 {dimension_numbers = #tpu.dot_dimension_numbers<[1], [0], [0], [1], [0, 0, 1, 1], [], []>} : vector<8x32xf32>, vector<32x32xf32>, vector<8x32xf32> -> vector<8x32xf32>
      %c0_73 = arith.constant 0 : index
      %c0_74 = arith.constant 0 : index
      %163 = vector.load %arg9[%c0_73, %c0_74] : memref<1x32xf32, #tpu.memory_space<vmem>>, vector<1x32xf32>
      %164 = vector.broadcast %163 : vector<1x32xf32> to vector<8x32xf32>
      %165 = arith.addf %162, %164 : vector<8x32xf32>
      %c0_75 = arith.constant 0 : index
      %c0_76 = arith.constant 0 : index
      %166 = vector.load %arg7[%c0_75, %c0_76] : memref<32x32xf32, #tpu.memory_space<vmem>>, vector<32x32xf32>
      %cst_77 = arith.constant dense<0.000000e+00> : vector<8x32xf32>
      %167 = tpu.matmul %160, %166, %cst_77 {dimension_numbers = #tpu.dot_dimension_numbers<[1], [0], [0], [1], [0, 0, 1, 1], [], []>} : vector<8x32xf32>, vector<32x32xf32>, vector<8x32xf32> -> vector<8x32xf32>
      %c0_78 = arith.constant 0 : index
      %c0_79 = arith.constant 0 : index
      %168 = vector.load %arg10[%c0_78, %c0_79] : memref<1x32xf32, #tpu.memory_space<vmem>>, vector<1x32xf32>
      %169 = vector.broadcast %168 : vector<1x32xf32> to vector<8x32xf32>
      %170 = arith.addf %167, %169 : vector<8x32xf32>
      %c0_80 = arith.constant 0 : index
      %c0_81 = arith.constant 0 : index
      %c0_82 = arith.constant 0 : index
      %171 = vector.load %arg20[%c0_80, %c0_81, %c0_82] : memref<1x8x32xf32, #tpu.memory_space<vmem>>, vector<1x8x32xf32>
      %172 = vector.shape_cast %171 : vector<1x8x32xf32> to vector<8x32xf32>
      %173 = vector.shape_cast %165 : vector<8x32xf32> to vector<1x8x32xf32>
      tpu.vector_store %arg20[%c0_80, %c0_81, %c0_82], %173 {strides = array<i32>} : memref<1x8x32xf32, #tpu.memory_space<vmem>>, vector<1x8x32xf32>,
      %c0_83 = arith.constant 0 : index
      %c0_84 = arith.constant 0 : index
      %c0_85 = arith.constant 0 : index
      %174 = vector.load %arg21[%c0_83, %c0_84, %c0_85] : memref<1x8x32xf32, #tpu.memory_space<vmem>>, vector<1x8x32xf32>
      %175 = vector.shape_cast %174 : vector<1x8x32xf32> to vector<8x32xf32>
      %176 = vector.shape_cast %170 : vector<8x32xf32> to vector<1x8x32xf32>
      tpu.vector_store %arg21[%c0_83, %c0_84, %c0_85], %176 {strides = array<i32>} : memref<1x8x32xf32, #tpu.memory_space<vmem>>, vector<1x8x32xf32>,
      %177 = vector.extract_strided_slice %165 {offsets = [0, 0], sizes = [8, 8], strides = [1, 1]} : vector<8x32xf32> to vector<8x8xf32>
      %178 = vector.extract_strided_slice %165 {offsets = [0, 8], sizes = [8, 8], strides = [1, 1]} : vector<8x32xf32> to vector<8x8xf32>
      %179 = vector.extract_strided_slice %165 {offsets = [0, 16], sizes = [8, 8], strides = [1, 1]} : vector<8x32xf32> to vector<8x8xf32>
      %180 = vector.extract_strided_slice %165 {offsets = [0, 24], sizes = [8, 8], strides = [1, 1]} : vector<8x32xf32> to vector<8x8xf32>
      %181 = vector.shape_cast %177 : vector<8x8xf32> to vector<1x8x8xf32>
      %182 = vector.shape_cast %178 : vector<8x8xf32> to vector<1x8x8xf32>
      %183 = vector.shape_cast %179 : vector<8x8xf32> to vector<1x8x8xf32>
      %184 = vector.shape_cast %180 : vector<8x8xf32> to vector<1x8x8xf32>
      %185 = tpu.concatenate %181, %182, %183, %184 in 0 : vector<1x8x8xf32>, vector<1x8x8xf32>, vector<1x8x8xf32>, vector<1x8x8xf32> -> vector<4x8x8xf32>
      %c0_86 = arith.constant 0 : index
      %c0_87 = arith.constant 0 : index
      %c0_88 = arith.constant 0 : index
      %186 = vector.load %arg22[%c0_86, %c0_87, %c0_88] : memref<4x8x8xf32, #tpu.memory_space<vmem>>, vector<4x8x8xf32>
      tpu.vector_store %arg22[%c0_86, %c0_87, %c0_88], %185 {strides = array<i32>} : memref<4x8x8xf32, #tpu.memory_space<vmem>>, vector<4x8x8xf32>,
      %187 = vector.extract_strided_slice %170 {offsets = [0, 0], sizes = [8, 8], strides = [1, 1]} : vector<8x32xf32> to vector<8x8xf32>
      %188 = vector.extract_strided_slice %170 {offsets = [0, 8], sizes = [8, 8], strides = [1, 1]} : vector<8x32xf32> to vector<8x8xf32>
      %189 = vector.extract_strided_slice %170 {offsets = [0, 16], sizes = [8, 8], strides = [1, 1]} : vector<8x32xf32> to vector<8x8xf32>
      %190 = vector.extract_strided_slice %170 {offsets = [0, 24], sizes = [8, 8], strides = [1, 1]} : vector<8x32xf32> to vector<8x8xf32>
      %191 = vector.shape_cast %187 : vector<8x8xf32> to vector<1x8x8xf32>
      %192 = vector.shape_cast %188 : vector<8x8xf32> to vector<1x8x8xf32>
      %193 = vector.shape_cast %189 : vector<8x8xf32> to vector<1x8x8xf32>
      %194 = vector.shape_cast %190 : vector<8x8xf32> to vector<1x8x8xf32>
      %195 = tpu.concatenate %191, %192, %193, %194 in 0 : vector<1x8x8xf32>, vector<1x8x8xf32>, vector<1x8x8xf32>, vector<1x8x8xf32> -> vector<4x8x8xf32>
      %c0_89 = arith.constant 0 : index
      %c0_90 = arith.constant 0 : index
      %c0_91 = arith.constant 0 : index
      %196 = vector.load %arg23[%c0_89, %c0_90, %c0_91] : memref<4x8x8xf32, #tpu.memory_space<vmem>>, vector<4x8x8xf32>
      tpu.vector_store %arg23[%c0_89, %c0_90, %c0_91], %195 {strides = array<i32>} : memref<4x8x8xf32, #tpu.memory_space<vmem>>, vector<4x8x8xf32>,
    } else {
    }
    %c8_i32 = arith.constant 8 : i32
    %3 = arith.muli %arg1, %c8_i32 : i32
    %4 = tpu.assume_multiple %3, 8 : i32
    %c0 = arith.constant 0 : index
    %5 = arith.index_cast %4 : i32 to index
    %c0_1 = arith.constant 0 : index
    %6 = vector.load %arg2[%c0, %5, %c0_1] : memref<1x8x32xf32, #tpu.memory_space<vmem>>, vector<1x8x32xf32>
    %7 = vector.shape_cast %6 : vector<1x8x32xf32> to vector<8x32xf32>
    %c0_2 = arith.constant 0 : index
    %c0_3 = arith.constant 0 : index
    %8 = vector.load %arg3[%c0_2, %c0_3] : memref<1x32xf32, #tpu.memory_space<vmem>>, vector<1x32xf32>
    %c0_4 = arith.constant 0 : index
    %c0_5 = arith.constant 0 : index
    %9 = vector.load %arg4[%c0_4, %c0_5] : memref<1x32xf32, #tpu.memory_space<vmem>>, vector<1x32xf32>
    %cst = arith.constant dense<0.000000e+00> : vector<8xf32>
    %10 = vector.multi_reduction <add>, %7, %cst [1] : vector<8x32xf32> to vector<8xf32>
    %11 = vector.shape_cast %10 : vector<8xf32> to vector<8x1xf32>
    %cst_6 = arith.constant 3.200000e+01 : f32
    %12 = vector.broadcast %cst_6 : f32 to vector<8x1xf32>
    %13 = arith.divf %11, %12 : vector<8x1xf32>
    %14 = vector.broadcast %13 : vector<8x1xf32> to vector<8x32xf32>
    %15 = arith.subf %7, %14 : vector<8x32xf32>
    %16 = arith.mulf %15, %15 : vector<8x32xf32>
    %cst_7 = arith.constant dense<0.000000e+00> : vector<8xf32>
    %17 = vector.multi_reduction <add>, %16, %cst_7 [1] : vector<8x32xf32> to vector<8xf32>
    %18 = vector.shape_cast %17 : vector<8xf32> to vector<8x1xf32>
    %cst_8 = arith.constant 3.200000e+01 : f32
    %19 = vector.broadcast %cst_8 : f32 to vector<8x1xf32>
    %20 = arith.divf %18, %19 : vector<8x1xf32>
    %21 = vector.broadcast %13 : vector<8x1xf32> to vector<8x32xf32>
    %22 = arith.subf %7, %21 : vector<8x32xf32>
    %cst_9 = arith.constant 9.99999974E-6 : f32
    %23 = vector.broadcast %cst_9 : f32 to vector<8x1xf32>
    %24 = arith.addf %20, %23 : vector<8x1xf32>
    %25 = math.sqrt %24 : vector<8x1xf32>
    %26 = vector.broadcast %25 : vector<8x1xf32> to vector<8x32xf32>
    %27 = arith.divf %22, %26 : vector<8x32xf32>
    %28 = vector.broadcast %8 : vector<1x32xf32> to vector<8x32xf32>
    %29 = arith.mulf %28, %27 : vector<8x32xf32>
    %30 = vector.broadcast %9 : vector<1x32xf32> to vector<8x32xf32>
    %31 = arith.addf %29, %30 : vector<8x32xf32>
    %c0_10 = arith.constant 0 : index
    %c0_11 = arith.constant 0 : index
    %32 = vector.load %arg5[%c0_10, %c0_11] : memref<32x32xf32, #tpu.memory_space<vmem>>, vector<32x32xf32>
    %cst_12 = arith.constant dense<0.000000e+00> : vector<8x32xf32>
    %33 = tpu.matmul %31, %32, %cst_12 {dimension_numbers = #tpu.dot_dimension_numbers<[1], [0], [0], [1], [0, 0, 1, 1], [], []>} : vector<8x32xf32>, vector<32x32xf32>, vector<8x32xf32> -> vector<8x32xf32>
    %c0_13 = arith.constant 0 : index
    %c0_14 = arith.constant 0 : index
    %34 = vector.load %arg8[%c0_13, %c0_14] : memref<1x32xf32, #tpu.memory_space<vmem>>, vector<1x32xf32>
    %35 = vector.broadcast %34 : vector<1x32xf32> to vector<8x32xf32>
    %36 = arith.addf %33, %35 : vector<8x32xf32>
    %37 = vector.extract_strided_slice %36 {offsets = [0, 0], sizes = [8, 8], strides = [1, 1]} : vector<8x32xf32> to vector<8x8xf32>
    %38 = vector.extract_strided_slice %36 {offsets = [0, 8], sizes = [8, 8], strides = [1, 1]} : vector<8x32xf32> to vector<8x8xf32>
    %39 = vector.extract_strided_slice %36 {offsets = [0, 16], sizes = [8, 8], strides = [1, 1]} : vector<8x32xf32> to vector<8x8xf32>
    %40 = vector.extract_strided_slice %36 {offsets = [0, 24], sizes = [8, 8], strides = [1, 1]} : vector<8x32xf32> to vector<8x8xf32>
    %41 = vector.shape_cast %37 : vector<8x8xf32> to vector<1x8x8xf32>
    %42 = vector.shape_cast %38 : vector<8x8xf32> to vector<1x8x8xf32>
    %43 = vector.shape_cast %39 : vector<8x8xf32> to vector<1x8x8xf32>
    %44 = vector.shape_cast %40 : vector<8x8xf32> to vector<1x8x8xf32>
    %45 = tpu.concatenate %41, %42, %43, %44 in 0 : vector<1x8x8xf32>, vector<1x8x8xf32>, vector<1x8x8xf32>, vector<1x8x8xf32> -> vector<4x8x8xf32>
    %c0_15 = arith.constant 0 : index
    %c0_16 = arith.constant 0 : index
    %c0_17 = arith.constant 0 : index
    %46 = vector.load %arg22[%c0_15, %c0_16, %c0_17] : memref<4x8x8xf32, #tpu.memory_space<vmem>>, vector<4x8x8xf32>
    "tpu.trace_start"() <{level = 10 : i32, message = "hqd,hkd->hqk"}> : () -> ()
    %cst_18 = arith.constant dense<0.000000e+00> : vector<4x8x8xf32>
    %47 = tpu.matmul %45, %46, %cst_18 {dimension_numbers = #tpu.dot_dimension_numbers<[2], [2], [1], [1], [0, 0, 0, 1, 1, 1], [0], [0]>} : vector<4x8x8xf32>, vector<4x8x8xf32>, vector<4x8x8xf32> -> vector<4x8x8xf32>
    "tpu.trace_stop"() : () -> ()
    %cst_19 = arith.constant 0.353553385 : f32
    %48 = vector.broadcast %cst_19 : f32 to vector<4x8x8xf32>
    %49 = arith.mulf %47, %48 : vector<4x8x8xf32>
    %50 = tpu.iota {dimensions = array<i32: 1>} : vector<4x8x8xi32>
    %51 = vector.broadcast %4 : i32 to vector<4x8x8xi32>
    %52 = arith.addi %51, %50 : vector<4x8x8xi32>
    %53 = tpu.iota {dimensions = array<i32: 2>} : vector<4x8x8xi32>
    %54 = arith.cmpi sge, %52, %53 : vector<4x8x8xi32>
    %cst_20 = arith.constant -1.000000e+10 : f32
    %55 = vector.broadcast %cst_20 : f32 to vector<4x8x8xf32>
    %56 = arith.select %54, %49, %55 : vector<4x8x8xi1>, vector<4x8x8xf32>
    %cst_21 = arith.constant dense<0xFF800000> : vector<4x8xf32>
    %57 = vector.multi_reduction <maximumf>, %56, %cst_21 [2] : vector<4x8x8xf32> to vector<4x8xf32>
    %58 = vector.shape_cast %57 : vector<4x8xf32> to vector<4x8x1xf32>
    %59 = vector.broadcast %58 : vector<4x8x1xf32> to vector<4x8x8xf32>
    %60 = arith.subf %56, %59 : vector<4x8x8xf32>
    %61 = math.exp %60 : vector<4x8x8xf32>
    %cst_22 = arith.constant dense<0.000000e+00> : vector<4x8xf32>
    %62 = vector.multi_reduction <add>, %61, %cst_22 [2] : vector<4x8x8xf32> to vector<4x8xf32>
    %63 = vector.shape_cast %62 : vector<4x8xf32> to vector<4x8x1xf32>
    %64 = tpu.reciprocal %63 {approx = true} : vector<4x8x1xf32> -> vector<4x8x1xf32>
    %65 = vector.broadcast %64 : vector<4x8x1xf32> to vector<4x8x8xf32>
    %66 = arith.mulf %61, %65 : vector<4x8x8xf32>
    %c0_23 = arith.constant 0 : index
    %c0_24 = arith.constant 0 : index
    %c0_25 = arith.constant 0 : index
    %67 = vector.load %arg23[%c0_23, %c0_24, %c0_25] : memref<4x8x8xf32, #tpu.memory_space<vmem>>, vector<4x8x8xf32>
    "tpu.trace_start"() <{level = 10 : i32, message = "hqk,hkd->hqd"}> : () -> ()
    %cst_26 = arith.constant dense<0.000000e+00> : vector<4x8x8xf32>
    %68 = tpu.matmul %66, %67, %cst_26 {dimension_numbers = #tpu.dot_dimension_numbers<[2], [1], [1], [2], [0, 0, 0, 1, 1, 2], [0], [0]>} : vector<4x8x8xf32>, vector<4x8x8xf32>, vector<4x8x8xf32> -> vector<4x8x8xf32>
    "tpu.trace_stop"() : () -> ()
    %69 = vector.extract_strided_slice %68 {offsets = [0, 0, 0], sizes = [1, 8, 8], strides = [1, 1, 1]} : vector<4x8x8xf32> to vector<1x8x8xf32>
    %70 = vector.shape_cast %69 : vector<1x8x8xf32> to vector<8x8xf32>
    %71 = vector.extract_strided_slice %68 {offsets = [1, 0, 0], sizes = [1, 8, 8], strides = [1, 1, 1]} : vector<4x8x8xf32> to vector<1x8x8xf32>
    %72 = vector.shape_cast %71 : vector<1x8x8xf32> to vector<8x8xf32>
    %73 = vector.extract_strided_slice %68 {offsets = [2, 0, 0], sizes = [1, 8, 8], strides = [1, 1, 1]} : vector<4x8x8xf32> to vector<1x8x8xf32>
    %74 = vector.shape_cast %73 : vector<1x8x8xf32> to vector<8x8xf32>
    %75 = vector.extract_strided_slice %68 {offsets = [3, 0, 0], sizes = [1, 8, 8], strides = [1, 1, 1]} : vector<4x8x8xf32> to vector<1x8x8xf32>
    %76 = vector.shape_cast %75 : vector<1x8x8xf32> to vector<8x8xf32>
    %77 = tpu.concatenate %70, %72, %74, %76 in 1 : vector<8x8xf32>, vector<8x8xf32>, vector<8x8xf32>, vector<8x8xf32> -> vector<8x32xf32>
    %c0_27 = arith.constant 0 : index
    %c0_28 = arith.constant 0 : index
    %78 = vector.load %arg11[%c0_27, %c0_28] : memref<32x32xf32, #tpu.memory_space<vmem>>, vector<32x32xf32>
    %cst_29 = arith.constant dense<0.000000e+00> : vector<8x32xf32>
    %79 = tpu.matmul %77, %78, %cst_29 {dimension_numbers = #tpu.dot_dimension_numbers<[1], [0], [0], [1], [0, 0, 1, 1], [], []>} : vector<8x32xf32>, vector<32x32xf32>, vector<8x32xf32> -> vector<8x32xf32>
    %c0_30 = arith.constant 0 : index
    %c0_31 = arith.constant 0 : index
    %80 = vector.load %arg12[%c0_30, %c0_31] : memref<1x32xf32, #tpu.memory_space<vmem>>, vector<1x32xf32>
    %81 = vector.broadcast %80 : vector<1x32xf32> to vector<8x32xf32>
    %82 = arith.addf %79, %81 : vector<8x32xf32>
    %83 = arith.addf %7, %82 : vector<8x32xf32>
    %c0_32 = arith.constant 0 : index
    %c0_33 = arith.constant 0 : index
    %84 = vector.load %arg13[%c0_32, %c0_33] : memref<1x32xf32, #tpu.memory_space<vmem>>, vector<1x32xf32>
    %c0_34 = arith.constant 0 : index
    %c0_35 = arith.constant 0 : index
    %85 = vector.load %arg14[%c0_34, %c0_35] : memref<1x32xf32, #tpu.memory_space<vmem>>, vector<1x32xf32>
    %cst_36 = arith.constant dense<0.000000e+00> : vector<8xf32>
    %86 = vector.multi_reduction <add>, %83, %cst_36 [1] : vector<8x32xf32> to vector<8xf32>
    %87 = vector.shape_cast %86 : vector<8xf32> to vector<8x1xf32>
    %cst_37 = arith.constant 3.200000e+01 : f32
    %88 = vector.broadcast %cst_37 : f32 to vector<8x1xf32>
    %89 = arith.divf %87, %88 : vector<8x1xf32>
    %90 = vector.broadcast %89 : vector<8x1xf32> to vector<8x32xf32>
    %91 = arith.subf %83, %90 : vector<8x32xf32>
    %92 = arith.mulf %91, %91 : vector<8x32xf32>
    %cst_38 = arith.constant dense<0.000000e+00> : vector<8xf32>
    %93 = vector.multi_reduction <add>, %92, %cst_38 [1] : vector<8x32xf32> to vector<8xf32>
    %94 = vector.shape_cast %93 : vector<8xf32> to vector<8x1xf32>
    %cst_39 = arith.constant 3.200000e+01 : f32
    %95 = vector.broadcast %cst_39 : f32 to vector<8x1xf32>
    %96 = arith.divf %94, %95 : vector<8x1xf32>
    %97 = vector.broadcast %89 : vector<8x1xf32> to vector<8x32xf32>
    %98 = arith.subf %83, %97 : vector<8x32xf32>
    %cst_40 = arith.constant 9.99999974E-6 : f32
    %99 = vector.broadcast %cst_40 : f32 to vector<8x1xf32>
    %100 = arith.addf %96, %99 : vector<8x1xf32>
    %101 = math.sqrt %100 : vector<8x1xf32>
    %102 = vector.broadcast %101 : vector<8x1xf32> to vector<8x32xf32>
    %103 = arith.divf %98, %102 : vector<8x32xf32>
    %104 = vector.broadcast %84 : vector<1x32xf32> to vector<8x32xf32>
    %105 = arith.mulf %104, %103 : vector<8x32xf32>
    %106 = vector.broadcast %85 : vector<1x32xf32> to vector<8x32xf32>
    %107 = arith.addf %105, %106 : vector<8x32xf32>
    %c0_41 = arith.constant 0 : index
    %c0_42 = arith.constant 0 : index
    %108 = vector.load %arg15[%c0_41, %c0_42] : memref<32x128xf32, #tpu.memory_space<vmem>>, vector<32x128xf32>
    %cst_43 = arith.constant dense<0.000000e+00> : vector<8x128xf32>
    %109 = tpu.matmul %107, %108, %cst_43 {dimension_numbers = #tpu.dot_dimension_numbers<[1], [0], [0], [1], [0, 0, 1, 1], [], []>} : vector<8x32xf32>, vector<32x128xf32>, vector<8x128xf32> -> vector<8x128xf32>
    %c0_44 = arith.constant 0 : index
    %c0_45 = arith.constant 0 : index
    %110 = vector.load %arg16[%c0_44, %c0_45] : memref<1x128xf32, #tpu.memory_space<vmem>>, vector<1x128xf32>
    %111 = vector.broadcast %110 : vector<1x128xf32> to vector<8x128xf32>
    %112 = arith.addf %109, %111 : vector<8x128xf32>
    %cst_46 = arith.constant 5.000000e-01 : f32
    %113 = vector.broadcast %cst_46 : f32 to vector<8x128xf32>
    %114 = arith.mulf %113, %112 : vector<8x128xf32>
    %115 = arith.mulf %112, %112 : vector<8x128xf32>
    %116 = arith.mulf %112, %115 : vector<8x128xf32>
    %cst_47 = arith.constant 4.471500e-02 : f32
    %117 = vector.broadcast %cst_47 : f32 to vector<8x128xf32>
    %118 = arith.mulf %117, %116 : vector<8x128xf32>
    %119 = arith.addf %112, %118 : vector<8x128xf32>
    %cst_48 = arith.constant 0.797884583 : f32
    %120 = vector.broadcast %cst_48 : f32 to vector<8x128xf32>
    %121 = arith.mulf %120, %119 : vector<8x128xf32>
    %122 = math.tanh %121 : vector<8x128xf32>
    %cst_49 = arith.constant 1.000000e+00 : f32
    %123 = vector.broadcast %cst_49 : f32 to vector<8x128xf32>
    %124 = arith.addf %123, %122 : vector<8x128xf32>
    %125 = arith.mulf %114, %124 : vector<8x128xf32>
    %c0_50 = arith.constant 0 : index
    %c0_51 = arith.constant 0 : index
    %126 = vector.load %arg17[%c0_50, %c0_51] : memref<128x32xf32, #tpu.memory_space<vmem>>, vector<128x32xf32>
    %cst_52 = arith.constant dense<0.000000e+00> : vector<8x32xf32>
    %127 = tpu.matmul %125, %126, %cst_52 {dimension_numbers = #tpu.dot_dimension_numbers<[1], [0], [0], [1], [0, 0, 1, 1], [], []>} : vector<8x128xf32>, vector<128x32xf32>, vector<8x32xf32> -> vector<8x32xf32>
    %c0_53 = arith.constant 0 : index
    %c0_54 = arith.constant 0 : index
    %128 = vector.load %arg18[%c0_53, %c0_54] : memref<1x32xf32, #tpu.memory_space<vmem>>, vector<1x32xf32>
    %129 = vector.broadcast %128 : vector<1x32xf32> to vector<8x32xf32>
    %130 = arith.addf %127, %129 : vector<8x32xf32>
    %131 = arith.addf %83, %130 : vector<8x32xf32>
    %c0_55 = arith.constant 0 : index
    %c0_56 = arith.constant 0 : index
    %c0_57 = arith.constant 0 : index
    %132 = vector.load %arg19[%c0_55, %c0_56, %c0_57] : memref<1x8x32xf32, #tpu.memory_space<vmem>>, vector<1x8x32xf32>
    %133 = vector.shape_cast %132 : vector<1x8x32xf32> to vector<8x32xf32>
    %134 = vector.shape_cast %131 : vector<8x32xf32> to vector<1x8x32xf32>
    tpu.vector_store %arg19[%c0_55, %c0_56, %c0_57], %134 {strides = array<i32>} : memref<1x8x32xf32, #tpu.memory_space<vmem>>, vector<1x8x32xf32>,
    return
  }
  func.func @transform_0(%arg0: i32, %arg1: i32) -> (i32, i32, i32) {
    %c0_i32 = arith.constant 0 : i32
    %c0_i32_0 = arith.constant 0 : i32
    %c0_i32_1 = arith.constant 0 : i32
    return %arg0, %c0_i32, %c0_i32_0 : i32, i32, i32
  }
  func.func @transform_1(%arg0: i32, %arg1: i32) -> (i32, i32) {
    %c0_i32 = arith.constant 0 : i32
    %c0_i32_0 = arith.constant 0 : i32
    %c0_i32_1 = arith.constant 0 : i32
    return %c0_i32, %c0_i32_0 : i32, i32
  }
  func.func @transform_2(%arg0: i32, %arg1: i32) -> (i32, i32) {
    %c0_i32 = arith.constant 0 : i32
    %c0_i32_0 = arith.constant 0 : i32
    %c0_i32_1 = arith.constant 0 : i32
    return %c0_i32, %c0_i32_0 : i32, i32
  }
  func.func @transform_3(%arg0: i32, %arg1: i32) -> (i32, i32) {
    %c0_i32 = arith.constant 0 : i32
    %c0_i32_0 = arith.constant 0 : i32
    %c0_i32_1 = arith.constant 0 : i32
    return %c0_i32, %c0_i32_0 : i32, i32
  }
  func.func @transform_4(%arg0: i32, %arg1: i32) -> (i32, i32) {
    %c0_i32 = arith.constant 0 : i32
    %c0_i32_0 = arith.constant 0 : i32
    %c0_i32_1 = arith.constant 0 : i32
    return %c0_i32, %c0_i32_0 : i32, i32
  }
  func.func @transform_5(%arg0: i32, %arg1: i32) -> (i32, i32) {
    %c0_i32 = arith.constant 0 : i32
    %c0_i32_0 = arith.constant 0 : i32
    %c0_i32_1 = arith.constant 0 : i32
    return %c0_i32, %c0_i32_0 : i32, i32
  }
  func.func @transform_6(%arg0: i32, %arg1: i32) -> (i32, i32) {
    %c0_i32 = arith.constant 0 : i32
    %c0_i32_0 = arith.constant 0 : i32
    %c0_i32_1 = arith.constant 0 : i32
    return %c0_i32, %c0_i32_0 : i32, i32
  }
  func.func @transform_7(%arg0: i32, %arg1: i32) -> (i32, i32) {
    %c0_i32 = arith.constant 0 : i32
    %c0_i32_0 = arith.constant 0 : i32
    %c0_i32_1 = arith.constant 0 : i32
    return %c0_i32, %c0_i32_0 : i32, i32
  }
  func.func @transform_8(%arg0: i32, %arg1: i32) -> (i32, i32) {
    %c0_i32 = arith.constant 0 : i32
    %c0_i32_0 = arith.constant 0 : i32
    %c0_i32_1 = arith.constant 0 : i32
    return %c0_i32, %c0_i32_0 : i32, i32
  }
  func.func @transform_9(%arg0: i32, %arg1: i32) -> (i32, i32) {
    %c0_i32 = arith.constant 0 : i32
    %c0_i32_0 = arith.constant 0 : i32
    %c0_i32_1 = arith.constant 0 : i32
    return %c0_i32, %c0_i32_0 : i32, i32
  }
  func.func @transform_10(%arg0: i32, %arg1: i32) -> (i32, i32) {
    %c0_i32 = arith.constant 0 : i32
    %c0_i32_0 = arith.constant 0 : i32
    %c0_i32_1 = arith.constant 0 : i32
    return %c0_i32, %c0_i32_0 : i32, i32
  }
  func.func @transform_11(%arg0: i32, %arg1: i32) -> (i32, i32) {
    %c0_i32 = arith.constant 0 : i32
    %c0_i32_0 = arith.constant 0 : i32
    %c0_i32_1 = arith.constant 0 : i32
    return %c0_i32, %c0_i32_0 : i32, i32
  }
  func.func @transform_12(%arg0: i32, %arg1: i32) -> (i32, i32) {
    %c0_i32 = arith.constant 0 : i32
    %c0_i32_0 = arith.constant 0 : i32
    %c0_i32_1 = arith.constant 0 : i32
    return %c0_i32, %c0_i32_0 : i32, i32
  }
  func.func @transform_13(%arg0: i32, %arg1: i32) -> (i32, i32) {
    %c0_i32 = arith.constant 0 : i32
    %c0_i32_0 = arith.constant 0 : i32
    %c0_i32_1 = arith.constant 0 : i32
    return %c0_i32, %c0_i32_0 : i32, i32
  }
  func.func @transform_14(%arg0: i32, %arg1: i32) -> (i32, i32) {
    %c0_i32 = arith.constant 0 : i32
    %c0_i32_0 = arith.constant 0 : i32
    %c0_i32_1 = arith.constant 0 : i32
    return %c0_i32, %c0_i32_0 : i32, i32
  }
  func.func @transform_15(%arg0: i32, %arg1: i32) -> (i32, i32) {
    %c0_i32 = arith.constant 0 : i32
    %c0_i32_0 = arith.constant 0 : i32
    %c0_i32_1 = arith.constant 0 : i32
    return %c0_i32, %c0_i32_0 : i32, i32
  }
  func.func @transform_16(%arg0: i32, %arg1: i32) -> (i32, i32) {
    %c0_i32 = arith.constant 0 : i32
    %c0_i32_0 = arith.constant 0 : i32
    %c0_i32_1 = arith.constant 0 : i32
    return %c0_i32, %c0_i32_0 : i32, i32
  }
  func.func @transform_17(%arg0: i32, %arg1: i32) -> (i32, i32, i32) {
    %c0_i32 = arith.constant 0 : i32
    %c0_i32_0 = arith.constant 0 : i32
    return %arg0, %arg1, %c0_i32 : i32, i32, i32
  }
  func.func @transform_18(%arg0: i32, %arg1: i32) -> (i32, i32, i32) {
    %c0_i32 = arith.constant 0 : i32
    %c0_i32_0 = arith.constant 0 : i32
    %c0_i32_1 = arith.constant 0 : i32
    return %arg0, %c0_i32, %c0_i32_0 : i32, i32, i32
  }
  func.func @transform_19(%arg0: i32, %arg1: i32) -> (i32, i32, i32) {
    %c0_i32 = arith.constant 0 : i32
    %c0_i32_0 = arith.constant 0 : i32
    %c0_i32_1 = arith.constant 0 : i32
    return %arg0, %c0_i32, %c0_i32_0 : i32, i32, i32
  }
}

</mosaic_0001>

<llo_original>
// kernel: tpu_custom_call.1
$region0: #{tpu_custom_call.1}
  #allocation0 [shape = 'u32[]', space=smem, size = 0x4, offset = 0x4, fixed_abs, tag = 'smem constant byte address 0x4 - core index']
  #allocation1 [shape = 'u32[144,128]{1,0:T(1,128)}', space=vmem, size = 0x12000, scoped, tag = 'internal scratch']
  #allocation2 [shape = 'f32[4,8,8]{2,1,0:T(8,128)}', space=vmem, size = 0x4000, scoped, tag = 'scratch operand']
  #allocation3 [shape = 'f32[4,8,8]{2,1,0:T(8,128)}', space=vmem, size = 0x4000, scoped, tag = 'scratch operand']
  %s0 = inlined_call_operand.hbm [shape: f32[2,8,32], index: 0, kind: input, shape index: {}]
  %s1 = inlined_call_operand.hbm [shape: f32[1,32], index: 1, kind: input, shape index: {}]
  %s2 = inlined_call_operand.hbm [shape: f32[1,32], index: 2, kind: input, shape index: {}]
  %s3 = inlined_call_operand.hbm [shape: f32[32,32], index: 3, kind: input, shape index: {}]
  %s4 = inlined_call_operand.hbm [shape: f32[32,32], index: 4, kind: input, shape index: {}]
  %s5 = inlined_call_operand.hbm [shape: f32[32,32], index: 5, kind: input, shape index: {}]
  %s6 = inlined_call_operand.hbm [shape: f32[1,32], index: 6, kind: input, shape index: {}]
  %s7 = inlined_call_operand.hbm [shape: f32[1,32], index: 7, kind: input, shape index: {}]
  %s8 = inlined_call_operand.hbm [shape: f32[1,32], index: 8, kind: input, shape index: {}]
  %s9 = inlined_call_operand.hbm [shape: f32[32,32], index: 9, kind: input, shape index: {}]
  %s10 = inlined_call_operand.hbm [shape: f32[1,32], index: 10, kind: input, shape index: {}]
  %s11 = inlined_call_operand.hbm [shape: f32[1,32], index: 11, kind: input, shape index: {}]
  %s12 = inlined_call_operand.hbm [shape: f32[1,32], index: 12, kind: input, shape index: {}]
  %s13 = inlined_call_operand.hbm [shape: f32[32,128], index: 13, kind: input, shape index: {}]
  %s14 = inlined_call_operand.hbm [shape: f32[1,128], index: 14, kind: input, shape index: {}]
  %s15 = inlined_call_operand.hbm [shape: f32[128,32], index: 15, kind: input, shape index: {}]
  %s16 = inlined_call_operand.hbm [shape: f32[1,32], index: 16, kind: input, shape index: {}]
  %s17 = inlined_call_operand.hbm [shape: f32[2,8,32], index: 17, kind: output, shape index: {0}]
  %s18 = inlined_call_operand.hbm [shape: f32[2,8,32], index: 18, kind: output, shape index: {1}]
  %s19 = inlined_call_operand.hbm [shape: f32[2,8,32], index: 19, kind: output, shape index: {2}]
  %20 = xla_tuple %s17, %s18, %s19
  %s21 = sld [smem:[#allocation0]]
  $region189: #{tpu_custom_call.1} parent=0
    _
  %s23 = ssub.s32 1, %s21
  %s24 = scalar_select 0, %s23, %s21
  $region1: #{tpu_custom_call.1} parent=0
    #allocation4 [shape = 'u8[8192]{0}', space=vmem, size = 0x2000, scoped, tag = 'input window, operand 0']
    #allocation5 [shape = 's32[2]{0}', space=sflag, size = 0x8, scoped, tag = 'scoped memory for tpu_custom_call.1']
    #allocation6 [shape = 's32[2]{0}', space=sflag, size = 0x8, scoped, tag = 'scoped memory for tpu_custom_call.1']
    #allocation7 [shape = 'u8[512]{0}', space=vmem, size = 0x400, scoped, tag = 'input window, operand 1, single buffered']
    #allocation8 [shape = 's32[1]{0}', space=sflag, size = 0x4, scoped, tag = 'scoped memory for tpu_custom_call.1']
    #allocation9 [shape = 'u8[512]{0}', space=vmem, size = 0x400, scoped, tag = 'input window, operand 2, single buffered']
    #allocation10 [shape = 'u8[16384]{0}', space=vmem, size = 0x4000, scoped, tag = 'input window, operand 3, single buffered']
    #allocation11 [shape = 's32[1]{0}', space=sflag, size = 0x4, scoped, tag = 'scoped memory for tpu_custom_call.1']
    #allocation12 [shape = 'u8[16384]{0}', space=vmem, size = 0x4000, scoped, tag = 'input window, operand 4, single buffered']
    #allocation13 [shape = 'u8[16384]{0}', space=vmem, size = 0x4000, scoped, tag = 'input window, operand 5, single buffered']
    #allocation14 [shape = 's32[1]{0}', space=sflag, size = 0x4, scoped, tag = 'scoped memory for tpu_custom_call.1']
    #allocation15 [shape = 'u8[512]{0}', space=vmem, size = 0x400, scoped, tag = 'input window, operand 6, single buffered']
    #allocation16 [shape = 'u8[512]{0}', space=vmem, size = 0x400, scoped, tag = 'input window, operand 7, single buffered']
    #allocation17 [shape = 's32[1]{0}', space=sflag, size = 0x4, scoped, tag = 'scoped memory for tpu_custom_call.1']
    #allocation18 [shape = 'u8[512]{0}', space=vmem, size = 0x400, scoped, tag = 'input window, operand 8, single buffered']
    #allocation19 [shape = 'u8[16384]{0}', space=vmem, size = 0x4000, scoped, tag = 'input window, operand 9, single buffered']
    #allocation20 [shape = 's32[1]{0}', space=sflag, size = 0x4, scoped, tag = 'scoped memory for tpu_custom_call.1']
    #allocation21 [shape = 'u8[512]{0}', space=vmem, size = 0x400, scoped, tag = 'input window, operand 10, single buffered']
    #allocation22 [shape = 'u8[512]{0}', space=vmem, size = 0x400, scoped, tag = 'input window, operand 11, single buffered']
    #allocation23 [shape = 's32[1]{0}', space=sflag, size = 0x4, scoped, tag = 'scoped memory for tpu_custom_call.1']
    #allocation24 [shape = 'u8[512]{0}', space=vmem, size = 0x400, scoped, tag = 'input window, operand 12, single buffered']
    #allocation25 [shape = 'u8[16384]{0}', space=vmem, size = 0x4000, scoped, tag = 'input window, operand 13, single buffered']
    #allocation26 [shape = 's32[1]{0}', space=sflag, size = 0x4, scoped, tag = 'scoped memory for tpu_custom_call.1']
    #allocation27 [shape = 'u8[512]{0}', space=vmem, size = 0x400, scoped, tag = 'input window, operand 14, single buffered']
    #allocation28 [shape = 'u8[65536]{0}', space=vmem, size = 0x10000, scoped, tag = 'input window, operand 15, single buffered']
    #allocation29 [shape = 's32[1]{0}', space=sflag, size = 0x4, scoped, tag = 'scoped memory for tpu_custom_call.1']
    #allocation30 [shape = 'u8[512]{0}', space=vmem, size = 0x400, scoped, tag = 'input window, operand 16, single buffered']
    #allocation31 [shape = 'u8[8192]{0}', space=vmem, size = 0x2000, scoped, tag = 'output window, operand 0']
    #allocation32 [shape = 'u8[8192]{0}', space=vmem, size = 0x2000, scoped, tag = 'output window, operand 1']
    #allocation33 [shape = 's32[2]{0}', space=sflag, size = 0x8, scoped, tag = 'scoped memory for tpu_custom_call.1']
    #allocation34 [shape = 'u8[8192]{0}', space=vmem, size = 0x2000, scoped, tag = 'output window, operand 2']
    %25 = vsyncpa [#allocation5], 0
    %s26 = scalar_lea.sflag [#allocation5], 1
    %27 = vsyncpa %s26, 0
    %28 = vsyncpa [#allocation8], 0
    %29 = vsyncpa [#allocation11], 0
    %30 = vsyncpa [#allocation14], 0
    %31 = vsyncpa [#allocation17], 0
    %32 = vsyncpa [#allocation20], 0
    %33 = vsyncpa [#allocation23], 0
    %34 = vsyncpa [#allocation26], 0
    %35 = vsyncpa [#allocation29], 0
    %36 = vsyncpa [#allocation6], 0
    %s37 = scalar_lea.sflag [#allocation6], 1
    %38 = vsyncpa %s37, 0
    %39 = vsyncpa [#allocation33], 0
    %s40 = scalar_lea.sflag [#allocation33], 1
    %41 = vsyncpa %s40, 0
    loop: start=0, step=1, limit=4
    $region2: #{tpu_custom_call.1} parent=1 // loop_pre_header
      _
    $region3: #{tpu_custom_call.1} parent=1 // loop_header
      %s43 = sphi 0, %s47
      %p44 = scmp.ge.s32.totalorder %s43, 4
      %s50 = sphi 0, %s62
      %s51 = sphi 0, %s58
      %s52 = sphi 0, %s50
      %s53 = sphi 0, %s51
      %s54 = sphi 0, %s52
      %s55 = sphi 0, %s53
      %s65 = sphi 0, %s67
      %s68 = sphi 0, %s65
      %s69 = sphi 0, %s68
      %s85 = sphi 0, %s69
      %s89 = sphi 0, %s89
      %s91 = sphi 0, %s89
      %s92 = sphi 0, %s91
      %s106 = sphi 0, %s92
      %s110 = sphi 0, %s110
      %s112 = sphi 0, %s110
      %s113 = sphi 0, %s112
      %s127 = sphi 0, %s113
      %s131 = sphi 0, %s131
      %s133 = sphi 0, %s131
      %s134 = sphi 0, %s133
      %s148 = sphi 0, %s134
      %s152 = sphi 0, %s152
      %s154 = sphi 0, %s152
      %s155 = sphi 0, %s154
      %s169 = sphi 0, %s155
      %s173 = sphi 0, %s173
      %s175 = sphi 0, %s173
      %s176 = sphi 0, %s175
      %s190 = sphi 0, %s176
      %s194 = sphi 0, %s194
      %s196 = sphi 0, %s194
      %s197 = sphi 0, %s196
      %s211 = sphi 0, %s197
      %s215 = sphi 0, %s215
      %s217 = sphi 0, %s215
      %s218 = sphi 0, %s217
      %s232 = sphi 0, %s218
      %s236 = sphi 0, %s236
      %s238 = sphi 0, %s236
      %s239 = sphi 0, %s238
      %s253 = sphi 0, %s239
      %s257 = sphi 0, %s257
      %s259 = sphi 0, %s257
      %s260 = sphi 0, %s259
      %s274 = sphi 0, %s260
      %s278 = sphi 0, %s278
      %s280 = sphi 0, %s278
      %s281 = sphi 0, %s280
      %s295 = sphi 0, %s281
      %s299 = sphi 0, %s299
      %s301 = sphi 0, %s299
      %s302 = sphi 0, %s301
      %s316 = sphi 0, %s302
      %s320 = sphi 0, %s320
      %s322 = sphi 0, %s320
      %s323 = sphi 0, %s322
      %s337 = sphi 0, %s323
      %s341 = sphi 0, %s341
      %s343 = sphi 0, %s341
      %s344 = sphi 0, %s343
      %s358 = sphi 0, %s344
      %s362 = sphi 0, %s362
      %s364 = sphi 0, %s362
      %s365 = sphi 0, %s364
      %s379 = sphi 0, %s365
      %s383 = sphi 0, %s383
      %s385 = sphi 0, %s383
      %s386 = sphi 0, %s385
      %s400 = sphi 0, %s386
      %s404 = sphi 0, %s404
      %s406 = sphi 0, %s404
      %s407 = sphi 0, %s406
      %s421 = sphi 0, %s407
      %s429 = sphi 0, %s431
      %s432 = sphi 0, %s429
      %s433 = sphi 0, %s432
      %s449 = sphi 0, %s433
      %s455 = sphi 0, %s457
      %s458 = sphi 0, %s455
      %s459 = sphi 0, %s458
      %s475 = sphi 0, %s459
      %s481 = sphi 0, %s483
      %s484 = sphi 0, %s481
      %s485 = sphi 0, %s484
      %s501 = sphi 0, %s485
    $region4: #{tpu_custom_call.1} parent=1 // loop_header_branch
      %46 = sbr.rel (%p44) target = $region8
    $region5: #{tpu_custom_call.1} parent=1 // loop_body
      %s48 = ssub.s32 %s43, 1
      %s49 = ssub.s32 %s43, 2
      %s56 = sadd.s32 1, %s51
      %p57 = scmp.ge.s32.totalorder %s56, 1
      %s58 = scalar_select %p57, 0, %s56
      %s59 = sadd.s32 1, %s50
      %s60 = scalar_select %p57, %s59, %s50
      %p61 = scmp.ge.s32.totalorder %s60, 2
      %s62 = scalar_select %p61, 0, %s60
      %s63 = ssub.s32 %s50, %s62
      %p64 = scmp.eq.s32.totalorder %s63, 0
      %s66 = sadd.s32 %s65, 1
      %s67 = scalar_select %p64, %s65, %s66
      %p70 = pneg %p64
      %p71 = scmp.eq.s32.totalorder %s43, 1
      %p72 = por %p70, %p71
      %p73 = scmp.ne.s32.totalorder %s65, %s68
      %p74 = scmp.eq.s32.totalorder %s43, 0
      %p75 = por %p73, %p74
      %p76 = scmp.ne.s32.totalorder %s65, %s68
      %p77 = scmp.eq.s32.totalorder %s48, 1
      %p78 = por %p76, %p77
      %p79 = scmp.ne.s32.totalorder %s68, %s69
      %p80 = scmp.eq.s32.totalorder %s48, 0
      %p81 = por %p79, %p80
      %p82 = scmp.ne.s32.totalorder %s68, %s69
      %p83 = scmp.eq.s32.totalorder %s49, 1
      %p84 = por %p82, %p83
      %p86 = scmp.ne.s32.totalorder %s69, %s85
      %p87 = scmp.eq.s32.totalorder %s49, 0
      %p88 = por %p86, %p87
      %s90 = sadd.s32 %s89, 1
      %p93 = scmp.eq.s32.totalorder %s43, 1
      %p94 = scmp.ne.s32.totalorder %s89, %s91
      %p95 = scmp.eq.s32.totalorder %s43, 0
      %p96 = por %p94, %p95
      %p97 = scmp.ne.s32.totalorder %s89, %s91
      %p98 = scmp.eq.s32.totalorder %s48, 1
      %p99 = por %p97, %p98
      %p100 = scmp.ne.s32.totalorder %s91, %s92
      %p101 = scmp.eq.s32.totalorder %s48, 0
      %p102 = por %p100, %p101
      %p103 = scmp.ne.s32.totalorder %s91, %s92
      %p104 = scmp.eq.s32.totalorder %s49, 1
      %p105 = por %p103, %p104
      %p107 = scmp.ne.s32.totalorder %s92, %s106
      %p108 = scmp.eq.s32.totalorder %s49, 0
      %p109 = por %p107, %p108
      %s111 = sadd.s32 %s110, 1
      %p114 = scmp.eq.s32.totalorder %s43, 1
      %p115 = scmp.ne.s32.totalorder %s110, %s112
      %p116 = scmp.eq.s32.totalorder %s43, 0
      %p117 = por %p115, %p116
      %p118 = scmp.ne.s32.totalorder %s110, %s112
      %p119 = scmp.eq.s32.totalorder %s48, 1
      %p120 = por %p118, %p119
      %p121 = scmp.ne.s32.totalorder %s112, %s113
      %p122 = scmp.eq.s32.totalorder %s48, 0
      %p123 = por %p121, %p122
      %p124 = scmp.ne.s32.totalorder %s112, %s113
      %p125 = scmp.eq.s32.totalorder %s49, 1
      %p126 = por %p124, %p125
      %p128 = scmp.ne.s32.totalorder %s113, %s127
      %p129 = scmp.eq.s32.totalorder %s49, 0
      %p130 = por %p128, %p129
      %s132 = sadd.s32 %s131, 1
      %p135 = scmp.eq.s32.totalorder %s43, 1
      %p136 = scmp.ne.s32.totalorder %s131, %s133
      %p137 = scmp.eq.s32.totalorder %s43, 0
      %p138 = por %p136, %p137
      %p139 = scmp.ne.s32.totalorder %s131, %s133
      %p140 = scmp.eq.s32.totalorder %s48, 1
      %p141 = por %p139, %p140
      %p142 = scmp.ne.s32.totalorder %s133, %s134
      %p143 = scmp.eq.s32.totalorder %s48, 0
      %p144 = por %p142, %p143
      %p145 = scmp.ne.s32.totalorder %s133, %s134
      %p146 = scmp.eq.s32.totalorder %s49, 1
      %p147 = por %p145, %p146
      %p149 = scmp.ne.s32.totalorder %s134, %s148
      %p150 = scmp.eq.s32.totalorder %s49, 0
      %p151 = por %p149, %p150
      %s153 = sadd.s32 %s152, 1
      %p156 = scmp.eq.s32.totalorder %s43, 1
      %p157 = scmp.ne.s32.totalorder %s152, %s154
      %p158 = scmp.eq.s32.totalorder %s43, 0
      %p159 = por %p157, %p158
      %p160 = scmp.ne.s32.totalorder %s152, %s154
      %p161 = scmp.eq.s32.totalorder %s48, 1
      %p162 = por %p160, %p161
      %p163 = scmp.ne.s32.totalorder %s154, %s155
      %p164 = scmp.eq.s32.totalorder %s48, 0
      %p165 = por %p163, %p164
      %p166 = scmp.ne.s32.totalorder %s154, %s155
      %p167 = scmp.eq.s32.totalorder %s49, 1
      %p168 = por %p166, %p167
      %p170 = scmp.ne.s32.totalorder %s155, %s169
      %p171 = scmp.eq.s32.totalorder %s49, 0
      %p172 = por %p170, %p171
      %s174 = sadd.s32 %s173, 1
      %p177 = scmp.eq.s32.totalorder %s43, 1
      %p178 = scmp.ne.s32.totalorder %s173, %s175
      %p179 = scmp.eq.s32.totalorder %s43, 0
      %p180 = por %p178, %p179
      %p181 = scmp.ne.s32.totalorder %s173, %s175
      %p182 = scmp.eq.s32.totalorder %s48, 1
      %p183 = por %p181, %p182
      %p184 = scmp.ne.s32.totalorder %s175, %s176
      %p185 = scmp.eq.s32.totalorder %s48, 0
      %p186 = por %p184, %p185
      %p187 = scmp.ne.s32.totalorder %s175, %s176
      %p188 = scmp.eq.s32.totalorder %s49, 1
      %p189 = por %p187, %p188
      %p191 = scmp.ne.s32.totalorder %s176, %s190
      %p192 = scmp.eq.s32.totalorder %s49, 0
      %p193 = por %p191, %p192
      %s195 = sadd.s32 %s194, 1
      %p198 = scmp.eq.s32.totalorder %s43, 1
      %p199 = scmp.ne.s32.totalorder %s194, %s196
      %p200 = scmp.eq.s32.totalorder %s43, 0
      %p201 = por %p199, %p200
      %p202 = scmp.ne.s32.totalorder %s194, %s196
      %p203 = scmp.eq.s32.totalorder %s48, 1
      %p204 = por %p202, %p203
      %p205 = scmp.ne.s32.totalorder %s196, %s197
      %p206 = scmp.eq.s32.totalorder %s48, 0
      %p207 = por %p205, %p206
      %p208 = scmp.ne.s32.totalorder %s196, %s197
      %p209 = scmp.eq.s32.totalorder %s49, 1
      %p210 = por %p208, %p209
      %p212 = scmp.ne.s32.totalorder %s197, %s211
      %p213 = scmp.eq.s32.totalorder %s49, 0
      %p214 = por %p212, %p213
      %s216 = sadd.s32 %s215, 1
      %p219 = scmp.eq.s32.totalorder %s43, 1
      %p220 = scmp.ne.s32.totalorder %s215, %s217
      %p221 = scmp.eq.s32.totalorder %s43, 0
      %p222 = por %p220, %p221
      %p223 = scmp.ne.s32.totalorder %s215, %s217
      %p224 = scmp.eq.s32.totalorder %s48, 1
      %p225 = por %p223, %p224
      %p226 = scmp.ne.s32.totalorder %s217, %s218
      %p227 = scmp.eq.s32.totalorder %s48, 0
      %p228 = por %p226, %p227
      %p229 = scmp.ne.s32.totalorder %s217, %s218
      %p230 = scmp.eq.s32.totalorder %s49, 1
      %p231 = por %p229, %p230
      %p233 = scmp.ne.s32.totalorder %s218, %s232
      %p234 = scmp.eq.s32.totalorder %s49, 0
      %p235 = por %p233, %p234
      %s237 = sadd.s32 %s236, 1
      %p240 = scmp.eq.s32.totalorder %s43, 1
      %p241 = scmp.ne.s32.totalorder %s236, %s238
      %p242 = scmp.eq.s32.totalorder %s43, 0
      %p243 = por %p241, %p242
      %p244 = scmp.ne.s32.totalorder %s236, %s238
      %p245 = scmp.eq.s32.totalorder %s48, 1
      %p246 = por %p244, %p245
      %p247 = scmp.ne.s32.totalorder %s238, %s239
      %p248 = scmp.eq.s32.totalorder %s48, 0
      %p249 = por %p247, %p248
      %p250 = scmp.ne.s32.totalorder %s238, %s239
      %p251 = scmp.eq.s32.totalorder %s49, 1
      %p252 = por %p250, %p251
      %p254 = scmp.ne.s32.totalorder %s239, %s253
      %p255 = scmp.eq.s32.totalorder %s49, 0
      %p256 = por %p254, %p255
      %s258 = sadd.s32 %s257, 1
      %p261 = scmp.eq.s32.totalorder %s43, 1
      %p262 = scmp.ne.s32.totalorder %s257, %s259
      %p263 = scmp.eq.s32.totalorder %s43, 0
      %p264 = por %p262, %p263
      %p265 = scmp.ne.s32.totalorder %s257, %s259
      %p266 = scmp.eq.s32.totalorder %s48, 1
      %p267 = por %p265, %p266
      %p268 = scmp.ne.s32.totalorder %s259, %s260
      %p269 = scmp.eq.s32.totalorder %s48, 0
      %p270 = por %p268, %p269
      %p271 = scmp.ne.s32.totalorder %s259, %s260
      %p272 = scmp.eq.s32.totalorder %s49, 1
      %p273 = por %p271, %p272
      %p275 = scmp.ne.s32.totalorder %s260, %s274
      %p276 = scmp.eq.s32.totalorder %s49, 0
      %p277 = por %p275, %p276
      %s279 = sadd.s32 %s278, 1
      %p282 = scmp.eq.s32.totalorder %s43, 1
      %p283 = scmp.ne.s32.totalorder %s278, %s280
      %p284 = scmp.eq.s32.totalorder %s43, 0
      %p285 = por %p283, %p284
      %p286 = scmp.ne.s32.totalorder %s278, %s280
      %p287 = scmp.eq.s32.totalorder %s48, 1
      %p288 = por %p286, %p287
      %p289 = scmp.ne.s32.totalorder %s280, %s281
      %p290 = scmp.eq.s32.totalorder %s48, 0
      %p291 = por %p289, %p290
      %p292 = scmp.ne.s32.totalorder %s280, %s281
      %p293 = scmp.eq.s32.totalorder %s49, 1
      %p294 = por %p292, %p293
      %p296 = scmp.ne.s32.totalorder %s281, %s295
      %p297 = scmp.eq.s32.totalorder %s49, 0
      %p298 = por %p296, %p297
      %s300 = sadd.s32 %s299, 1
      %p303 = scmp.eq.s32.totalorder %s43, 1
      %p304 = scmp.ne.s32.totalorder %s299, %s301
      %p305 = scmp.eq.s32.totalorder %s43, 0
      %p306 = por %p304, %p305
      %p307 = scmp.ne.s32.totalorder %s299, %s301
      %p308 = scmp.eq.s32.totalorder %s48, 1
      %p309 = por %p307, %p308
      %p310 = scmp.ne.s32.totalorder %s301, %s302
      %p311 = scmp.eq.s32.totalorder %s48, 0
      %p312 = por %p310, %p311
      %p313 = scmp.ne.s32.totalorder %s301, %s302
      %p314 = scmp.eq.s32.totalorder %s49, 1
      %p315 = por %p313, %p314
      %p317 = scmp.ne.s32.totalorder %s302, %s316
      %p318 = scmp.eq.s32.totalorder %s49, 0
      %p319 = por %p317, %p318
      %s321 = sadd.s32 %s320, 1
      %p324 = scmp.eq.s32.totalorder %s43, 1
      %p325 = scmp.ne.s32.totalorder %s320, %s322
      %p326 = scmp.eq.s32.totalorder %s43, 0
      %p327 = por %p325, %p326
      %p328 = scmp.ne.s32.totalorder %s320, %s322
      %p329 = scmp.eq.s32.totalorder %s48, 1
      %p330 = por %p328, %p329
      %p331 = scmp.ne.s32.totalorder %s322, %s323
      %p332 = scmp.eq.s32.totalorder %s48, 0
      %p333 = por %p331, %p332
      %p334 = scmp.ne.s32.totalorder %s322, %s323
      %p335 = scmp.eq.s32.totalorder %s49, 1
      %p336 = por %p334, %p335
      %p338 = scmp.ne.s32.totalorder %s323, %s337
      %p339 = scmp.eq.s32.totalorder %s49, 0
      %p340 = por %p338, %p339
      %s342 = sadd.s32 %s341, 1
      %p345 = scmp.eq.s32.totalorder %s43, 1
      %p346 = scmp.ne.s32.totalorder %s341, %s343
      %p347 = scmp.eq.s32.totalorder %s43, 0
      %p348 = por %p346, %p347
      %p349 = scmp.ne.s32.totalorder %s341, %s343
      %p350 = scmp.eq.s32.totalorder %s48, 1
      %p351 = por %p349, %p350
      %p352 = scmp.ne.s32.totalorder %s343, %s344
      %p353 = scmp.eq.s32.totalorder %s48, 0
      %p354 = por %p352, %p353
      %p355 = scmp.ne.s32.totalorder %s343, %s344
      %p356 = scmp.eq.s32.totalorder %s49, 1
      %p357 = por %p355, %p356
      %p359 = scmp.ne.s32.totalorder %s344, %s358
      %p360 = scmp.eq.s32.totalorder %s49, 0
      %p361 = por %p359, %p360
      %s363 = sadd.s32 %s362, 1
      %p366 = scmp.eq.s32.totalorder %s43, 1
      %p367 = scmp.ne.s32.totalorder %s362, %s364
      %p368 = scmp.eq.s32.totalorder %s43, 0
      %p369 = por %p367, %p368
      %p370 = scmp.ne.s32.totalorder %s362, %s364
      %p371 = scmp.eq.s32.totalorder %s48, 1
      %p372 = por %p370, %p371
      %p373 = scmp.ne.s32.totalorder %s364, %s365
      %p374 = scmp.eq.s32.totalorder %s48, 0
      %p375 = por %p373, %p374
      %p376 = scmp.ne.s32.totalorder %s364, %s365
      %p377 = scmp.eq.s32.totalorder %s49, 1
      %p378 = por %p376, %p377
      %p380 = scmp.ne.s32.totalorder %s365, %s379
      %p381 = scmp.eq.s32.totalorder %s49, 0
      %p382 = por %p380, %p381
      %s384 = sadd.s32 %s383, 1
      %p387 = scmp.eq.s32.totalorder %s43, 1
      %p388 = scmp.ne.s32.totalorder %s383, %s385
      %p389 = scmp.eq.s32.totalorder %s43, 0
      %p390 = por %p388, %p389
      %p391 = scmp.ne.s32.totalorder %s383, %s385
      %p392 = scmp.eq.s32.totalorder %s48, 1
      %p393 = por %p391, %p392
      %p394 = scmp.ne.s32.totalorder %s385, %s386
      %p395 = scmp.eq.s32.totalorder %s48, 0
      %p396 = por %p394, %p395
      %p397 = scmp.ne.s32.totalorder %s385, %s386
      %p398 = scmp.eq.s32.totalorder %s49, 1
      %p399 = por %p397, %p398
      %p401 = scmp.ne.s32.totalorder %s386, %s400
      %p402 = scmp.eq.s32.totalorder %s49, 0
      %p403 = por %p401, %p402
      %s405 = sadd.s32 %s404, 1
      %p408 = scmp.eq.s32.totalorder %s43, 1
      %p409 = scmp.ne.s32.totalorder %s404, %s406
      %p410 = scmp.eq.s32.totalorder %s43, 0
      %p411 = por %p409, %p410
      %p412 = scmp.ne.s32.totalorder %s404, %s406
      %p413 = scmp.eq.s32.totalorder %s48, 1
      %p414 = por %p412, %p413
      %p415 = scmp.ne.s32.totalorder %s406, %s407
      %p416 = scmp.eq.s32.totalorder %s48, 0
      %p417 = por %p415, %p416
      %p418 = scmp.ne.s32.totalorder %s406, %s407
      %p419 = scmp.eq.s32.totalorder %s49, 1
      %p420 = por %p418, %p419
      %p422 = scmp.ne.s32.totalorder %s407, %s421
      %p423 = scmp.eq.s32.totalorder %s49, 0
      %p424 = por %p422, %p423
      %s425 = ssub.s32 %s50, %s62
      %s426 = ssub.s32 %s51, %s58
      %s427 = sor.u32 %s425, %s426
      %p428 = scmp.eq.s32.totalorder %s427, 0
      %s430 = sadd.s32 %s429, 1
      %s431 = scalar_select %p428, %s429, %s430
      %p434 = pneg %p428
      %p435 = scmp.eq.s32.totalorder %s43, 1
      %p436 = por %p434, %p435
      %p437 = scmp.ne.s32.totalorder %s429, %s432
      %p438 = scmp.eq.s32.totalorder %s43, 0
      %p439 = por %p437, %p438
      %p440 = scmp.ne.s32.totalorder %s429, %s432
      %p441 = scmp.eq.s32.totalorder %s48, 1
      %p442 = por %p440, %p441
      %p443 = scmp.ne.s32.totalorder %s432, %s433
      %p444 = scmp.eq.s32.totalorder %s48, 0
      %p445 = por %p443, %p444
      %p446 = scmp.ne.s32.totalorder %s432, %s433
      %p447 = scmp.eq.s32.totalorder %s49, 1
      %p448 = por %p446, %p447
      %p450 = scmp.ne.s32.totalorder %s433, %s449
      %p451 = scmp.eq.s32.totalorder %s49, 0
      %p452 = por %p450, %p451
      %s453 = ssub.s32 %s50, %s62
      %p454 = scmp.eq.s32.totalorder %s453, 0
      %s456 = sadd.s32 %s455, 1
      %s457 = scalar_select %p454, %s455, %s456
      %p460 = pneg %p454
      %p461 = scmp.eq.s32.totalorder %s43, 1
      %p462 = por %p460, %p461
      %p463 = scmp.ne.s32.totalorder %s455, %s458
      %p464 = scmp.eq.s32.totalorder %s43, 0
      %p465 = por %p463, %p464
      %p466 = scmp.ne.s32.totalorder %s455, %s458
      %p467 = scmp.eq.s32.totalorder %s48, 1
      %p468 = por %p466, %p467
      %p469 = scmp.ne.s32.totalorder %s458, %s459
      %p470 = scmp.eq.s32.totalorder %s48, 0
      %p471 = por %p469, %p470
      %p472 = scmp.ne.s32.totalorder %s458, %s459
      %p473 = scmp.eq.s32.totalorder %s49, 1
      %p474 = por %p472, %p473
      %p476 = scmp.ne.s32.totalorder %s459, %s475
      %p477 = scmp.eq.s32.totalorder %s49, 0
      %p478 = por %p476, %p477
      %s479 = ssub.s32 %s50, %s62
      %p480 = scmp.eq.s32.totalorder %s479, 0
      %s482 = sadd.s32 %s481, 1
      %s483 = scalar_select %p480, %s481, %s482
      %p486 = pneg %p480
      %p487 = scmp.eq.s32.totalorder %s43, 1
      %p488 = por %p486, %p487
      %p489 = scmp.ne.s32.totalorder %s481, %s484
      %p490 = scmp.eq.s32.totalorder %s43, 0
      %p491 = por %p489, %p490
      %p492 = scmp.ne.s32.totalorder %s481, %s484
      %p493 = scmp.eq.s32.totalorder %s48, 1
      %p494 = por %p492, %p493
      %p495 = scmp.ne.s32.totalorder %s484, %s485
      %p496 = scmp.eq.s32.totalorder %s48, 0
      %p497 = por %p495, %p496
      %p498 = scmp.ne.s32.totalorder %s484, %s485
      %p499 = scmp.eq.s32.totalorder %s49, 1
      %p500 = por %p498, %p499
      %p502 = scmp.ne.s32.totalorder %s485, %s501
      %p503 = scmp.eq.s32.totalorder %s49, 0
      %p504 = por %p502, %p503
      %p505 = scmp.le.s32.totalorder 1, %s43
      %p506 = scmp.lt.s32.totalorder %s43, 3
      %p507 = pnand %p505, %p506
      %p508 = pneg %p507
      // Predicated region
      $region9: #{tpu_custom_call.1} parent=5 // pred_check
        _
      $region10: #{tpu_custom_call.1} parent=5 // pred_check_branch
        %510 = sbr.rel (%p507) target = $region12
      $region11: #{tpu_custom_call.1} parent=5 // pred_region
        %s511 = ssub.s32 %s43, 1
        // Predicated region
        $region13: #{tpu_custom_call.1} parent=11 // pred_check
          %p512 = pneg %p102
        $region14: #{tpu_custom_call.1} parent=11 // pred_check_branch
          %514 = sbr.rel (%p512) target = $region16
        $region15: #{tpu_custom_call.1} parent=11 // pred_region
          %s516 = ssub.s32 16, 16
          %517 = vsyncadd [#allocation8], %s516
          %s519 = sshll.u32 [#allocation7], 4
          %s520 = int_to_ptr.vmem [resolvable:$true] %s519
          %522 = dma.hbm_to_vmem [thread:$0]  %s1, 16, %s520, [#allocation8]
        $region16: #{tpu_custom_call.1} parent=11 // pred_fallthru
          _
        // Predicated region
        $region17: #{tpu_custom_call.1} parent=11 // pred_check
          %p523 = pneg %p123
        $region18: #{tpu_custom_call.1} parent=11 // pred_check_branch
          %525 = sbr.rel (%p523) target = $region20
        $region19: #{tpu_custom_call.1} parent=11 // pred_region
          %s527 = ssub.s32 16, 16
          %528 = vsyncadd [#allocation8], %s527
          %s530 = sshll.u32 [#allocation9], 4
          %s531 = int_to_ptr.vmem [resolvable:$true] %s530
          %533 = dma.hbm_to_vmem [thread:$0]  %s2, 16, %s531, [#allocation8]
        $region20: #{tpu_custom_call.1} parent=11 // pred_fallthru
          _
        // Predicated region
        $region21: #{tpu_custom_call.1} parent=11 // pred_check
          %p534 = pneg %p144
        $region22: #{tpu_custom_call.1} parent=11 // pred_check_branch
          %536 = sbr.rel (%p534) target = $region24
        $region23: #{tpu_custom_call.1} parent=11 // pred_region
          %s538 = ssub.s32 512, 512
          %539 = vsyncadd [#allocation11], %s538
          %s540 = sshll.u32 [#allocation10], 4
          %s541 = int_to_ptr.vmem [resolvable:$true] %s540
          %546 = dma.hbm_to_vmem [thread:$0]  %s3, 512, %s541, [#allocation11], 128, 128, 8
        $region24: #{tpu_custom_call.1} parent=11 // pred_fallthru
          _
        // Predicated region
        $region25: #{tpu_custom_call.1} parent=11 // pred_check
          %p547 = pneg %p165
        $region26: #{tpu_custom_call.1} parent=11 // pred_check_branch
          %549 = sbr.rel (%p547) target = $region28
        $region27: #{tpu_custom_call.1} parent=11 // pred_region
          %s551 = ssub.s32 512, 512
          %552 = vsyncadd [#allocation11], %s551
          %s553 = sshll.u32 [#allocation12], 4
          %s554 = int_to_ptr.vmem [resolvable:$true] %s553
          %559 = dma.hbm_to_vmem [thread:$0]  %s4, 512, %s554, [#allocation11], 128, 128, 8
        $region28: #{tpu_custom_call.1} parent=11 // pred_fallthru
          _
        // Predicated region
        $region29: #{tpu_custom_call.1} parent=11 // pred_check
          %p560 = pneg %p186
        $region30: #{tpu_custom_call.1} parent=11 // pred_check_branch
          %562 = sbr.rel (%p560) target = $region32
        $region31: #{tpu_custom_call.1} parent=11 // pred_region
          %s564 = ssub.s32 512, 512
          %565 = vsyncadd [#allocation14], %s564
          %s566 = sshll.u32 [#allocation13], 4
          %s567 = int_to_ptr.vmem [resolvable:$true] %s566
          %572 = dma.hbm_to_vmem [thread:$0]  %s5, 512, %s567, [#allocation14], 128, 128, 8
        $region32: #{tpu_custom_call.1} parent=11 // pred_fallthru
          _
        // Predicated region
        $region33: #{tpu_custom_call.1} parent=11 // pred_check
          %p573 = pneg %p207
        $region34: #{tpu_custom_call.1} parent=11 // pred_check_branch
          %575 = sbr.rel (%p573) target = $region36
        $region35: #{tpu_custom_call.1} parent=11 // pred_region
          %s577 = ssub.s32 16, 16
          %578 = vsyncadd [#allocation14], %s577
          %s580 = sshll.u32 [#allocation15], 4
          %s581 = int_to_ptr.vmem [resolvable:$true] %s580
          %583 = dma.hbm_to_vmem [thread:$0]  %s6, 16, %s581, [#allocation14]
        $region36: #{tpu_custom_call.1} parent=11 // pred_fallthru
          _
        // Predicated region
        $region37: #{tpu_custom_call.1} parent=11 // pred_check
          %p584 = pneg %p228
        $region38: #{tpu_custom_call.1} parent=11 // pred_check_branch
          %586 = sbr.rel (%p584) target = $region40
        $region39: #{tpu_custom_call.1} parent=11 // pred_region
          %s588 = ssub.s32 16, 16
          %589 = vsyncadd [#allocation17], %s588
          %s591 = sshll.u32 [#allocation16], 4
          %s592 = int_to_ptr.vmem [resolvable:$true] %s591
          %594 = dma.hbm_to_vmem [thread:$0]  %s7, 16, %s592, [#allocation17]
        $region40: #{tpu_custom_call.1} parent=11 // pred_fallthru
          _
        // Predicated region
        $region41: #{tpu_custom_call.1} parent=11 // pred_check
          %p595 = pneg %p249
        $region42: #{tpu_custom_call.1} parent=11 // pred_check_branch
          %597 = sbr.rel (%p595) target = $region44
        $region43: #{tpu_custom_call.1} parent=11 // pred_region
          %s599 = ssub.s32 16, 16
          %600 = vsyncadd [#allocation17], %s599
          %s602 = sshll.u32 [#allocation18], 4
          %s603 = int_to_ptr.vmem [resolvable:$true] %s602
          %605 = dma.hbm_to_vmem [thread:$0]  %s8, 16, %s603, [#allocation17]
        $region44: #{tpu_custom_call.1} parent=11 // pred_fallthru
          _
        // Predicated region
        $region45: #{tpu_custom_call.1} parent=11 // pred_check
          %p606 = pneg %p270
        $region46: #{tpu_custom_call.1} parent=11 // pred_check_branch
          %608 = sbr.rel (%p606) target = $region48
        $region47: #{tpu_custom_call.1} parent=11 // pred_region
          %s610 = ssub.s32 512, 512
          %611 = vsyncadd [#allocation20], %s610
          %s612 = sshll.u32 [#allocation19], 4
          %s613 = int_to_ptr.vmem [resolvable:$true] %s612
          %618 = dma.hbm_to_vmem [thread:$0]  %s9, 512, %s613, [#allocation20], 128, 128, 8
        $region48: #{tpu_custom_call.1} parent=11 // pred_fallthru
          _
        // Predicated region
        $region49: #{tpu_custom_call.1} parent=11 // pred_check
          %p619 = pneg %p291
        $region50: #{tpu_custom_call.1} parent=11 // pred_check_branch
          %621 = sbr.rel (%p619) target = $region52
        $region51: #{tpu_custom_call.1} parent=11 // pred_region
          %s623 = ssub.s32 16, 16
          %624 = vsyncadd [#allocation20], %s623
          %s626 = sshll.u32 [#allocation21], 4
          %s627 = int_to_ptr.vmem [resolvable:$true] %s626
          %629 = dma.hbm_to_vmem [thread:$0]  %s10, 16, %s627, [#allocation20]
        $region52: #{tpu_custom_call.1} parent=11 // pred_fallthru
          _
        // Predicated region
        $region53: #{tpu_custom_call.1} parent=11 // pred_check
          %p630 = pneg %p312
        $region54: #{tpu_custom_call.1} parent=11 // pred_check_branch
          %632 = sbr.rel (%p630) target = $region56
        $region55: #{tpu_custom_call.1} parent=11 // pred_region
          %s634 = ssub.s32 16, 16
          %635 = vsyncadd [#allocation23], %s634
          %s637 = sshll.u32 [#allocation22], 4
          %s638 = int_to_ptr.vmem [resolvable:$true] %s637
          %640 = dma.hbm_to_vmem [thread:$0]  %s11, 16, %s638, [#allocation23]
        $region56: #{tpu_custom_call.1} parent=11 // pred_fallthru
          _
        // Predicated region
        $region57: #{tpu_custom_call.1} parent=11 // pred_check
          %p641 = pneg %p333
        $region58: #{tpu_custom_call.1} parent=11 // pred_check_branch
          %643 = sbr.rel (%p641) target = $region60
        $region59: #{tpu_custom_call.1} parent=11 // pred_region
          %s645 = ssub.s32 16, 16
          %646 = vsyncadd [#allocation23], %s645
          %s648 = sshll.u32 [#allocation24], 4
          %s649 = int_to_ptr.vmem [resolvable:$true] %s648
          %651 = dma.hbm_to_vmem [thread:$0]  %s12, 16, %s649, [#allocation23]
        $region60: #{tpu_custom_call.1} parent=11 // pred_fallthru
          _
        // Predicated region
        $region61: #{tpu_custom_call.1} parent=11 // pred_check
          %p652 = pneg %p354
        $region62: #{tpu_custom_call.1} parent=11 // pred_check_branch
          %654 = sbr.rel (%p652) target = $region64
        $region63: #{tpu_custom_call.1} parent=11 // pred_region
          %s656 = ssub.s32 512, 512
          %657 = vsyncadd [#allocation26], %s656
          %s658 = sshll.u32 [#allocation25], 4
          %s659 = int_to_ptr.vmem [resolvable:$true] %s658
          %664 = dma.hbm_to_vmem [thread:$0]  %s13, 512, %s659, [#allocation26], 128, 128, 8
        $region64: #{tpu_custom_call.1} parent=11 // pred_fallthru
          _
        // Predicated region
        $region65: #{tpu_custom_call.1} parent=11 // pred_check
          %p665 = pneg %p375
        $region66: #{tpu_custom_call.1} parent=11 // pred_check_branch
          %667 = sbr.rel (%p665) target = $region68
        $region67: #{tpu_custom_call.1} parent=11 // pred_region
          %s669 = ssub.s32 16, 16
          %670 = vsyncadd [#allocation26], %s669
          %s672 = sshll.u32 [#allocation27], 4
          %s673 = int_to_ptr.vmem [resolvable:$true] %s672
          %675 = dma.hbm_to_vmem [thread:$0]  %s14, 16, %s673, [#allocation26]
        $region68: #{tpu_custom_call.1} parent=11 // pred_fallthru
          _
        // Predicated region
        $region69: #{tpu_custom_call.1} parent=11 // pred_check
          %p676 = pneg %p396
        $region70: #{tpu_custom_call.1} parent=11 // pred_check_branch
          %678 = sbr.rel (%p676) target = $region72
        $region71: #{tpu_custom_call.1} parent=11 // pred_region
          %s680 = ssub.s32 2048, 2048
          %681 = vsyncadd [#allocation29], %s680
          %s682 = sshll.u32 [#allocation28], 4
          %s683 = int_to_ptr.vmem [resolvable:$true] %s682
          %688 = dma.hbm_to_vmem [thread:$0]  %s15, 2048, %s683, [#allocation29], 128, 128, 8
        $region72: #{tpu_custom_call.1} parent=11 // pred_fallthru
          _
        // Predicated region
        $region73: #{tpu_custom_call.1} parent=11 // pred_check
          %p689 = pneg %p417
        $region74: #{tpu_custom_call.1} parent=11 // pred_check_branch
          %691 = sbr.rel (%p689) target = $region76
        $region75: #{tpu_custom_call.1} parent=11 // pred_region
          %s693 = ssub.s32 16, 16
          %694 = vsyncadd [#allocation29], %s693
          %s696 = sshll.u32 [#allocation30], 4
          %s697 = int_to_ptr.vmem [resolvable:$true] %s696
          %699 = dma.hbm_to_vmem [thread:$0]  %s16, 16, %s697, [#allocation29]
        $region76: #{tpu_custom_call.1} parent=11 // pred_fallthru
          _
      $region12: #{tpu_custom_call.1} parent=5 // pred_fallthru
        _
      %p700 = scmp.lt.s32.totalorder %s43, 2
      // Predicated region
      $region77: #{tpu_custom_call.1} parent=5 // pred_check
        %p701 = pneg %p700
      $region78: #{tpu_custom_call.1} parent=5 // pred_check_branch
        %703 = sbr.rel (%p701) target = $region80
      $region79: #{tpu_custom_call.1} parent=5 // pred_region
        // Predicated region
        $region81: #{tpu_custom_call.1} parent=79 // pred_check
          %p704 = pneg %p75
        $region82: #{tpu_custom_call.1} parent=79 // pred_check_branch
          %706 = sbr.rel (%p704) target = $region84
        $region83: #{tpu_custom_call.1} parent=79 // pred_region
          %s707 = sand.u32 %s65, 1
          %s708 = scalar_lea.sflag [#allocation5], %s707
          %s709 = sand.u32 %s65, 1
          %s710 = smul.addr %s709, 8
          %s711 = scalar_lea.vmem [#allocation4], %s710
          %s713 = ssub.s32 128, 128
          %714 = vsyncadd %s708, %s713
          %s715 = smul.addr %s50, 128
          %s716 = scalar_lea.hbm %s0, %s715
          %s718 = sshll.u32 %s711, 4
          %s719 = int_to_ptr.vmem [resolvable:$true] %s718
          %721 = dma.hbm_to_vmem [thread:$0]  %s716, 128, %s719, %s708
        $region84: #{tpu_custom_call.1} parent=79 // pred_fallthru
          _
      $region80: #{tpu_custom_call.1} parent=5 // pred_fallthru
        _
      %p722 = scmp.le.s32.totalorder 1, %s43
      %p723 = scmp.lt.s32.totalorder %s43, 3
      %p724 = pnand %p722, %p723
      %p725 = pneg %p724
      // Predicated region
      $region85: #{tpu_custom_call.1} parent=5 // pred_check
        _
      $region86: #{tpu_custom_call.1} parent=5 // pred_check_branch
        %727 = sbr.rel (%p724) target = $region88
      $region87: #{tpu_custom_call.1} parent=5 // pred_region
        %s728 = ssub.s32 %s43, 1
        %s729 = sand.u32 %s68, 1
        %s730 = scalar_lea.sflag [#allocation5], %s729
        %s731 = sand.u32 %s68, 1
        %s732 = smul.addr %s731, 8
        %s733 = scalar_lea.vmem [#allocation4], %s732
        // Predicated region
        $region89: #{tpu_custom_call.1} parent=87 // pred_check
          %p734 = pneg %p81
        $region90: #{tpu_custom_call.1} parent=87 // pred_check_branch
          %736 = sbr.rel (%p734) target = $region92
        $region91: #{tpu_custom_call.1} parent=87 // pred_region
          %737 = dma.done %s730, 128
        $region92: #{tpu_custom_call.1} parent=87 // pred_fallthru
          _
        // Predicated region
        $region93: #{tpu_custom_call.1} parent=87 // pred_check
          %p738 = pneg %p102
        $region94: #{tpu_custom_call.1} parent=87 // pred_check_branch
          %740 = sbr.rel (%p738) target = $region96
        $region95: #{tpu_custom_call.1} parent=87 // pred_region
          %741 = dma.done [#allocation8], 16
        $region96: #{tpu_custom_call.1} parent=87 // pred_fallthru
          _
        // Predicated region
        $region97: #{tpu_custom_call.1} parent=87 // pred_check
          %p742 = pneg %p123
        $region98: #{tpu_custom_call.1} parent=87 // pred_check_branch
          %744 = sbr.rel (%p742) target = $region100
        $region99: #{tpu_custom_call.1} parent=87 // pred_region
          %745 = dma.done [#allocation8], 16
        $region100: #{tpu_custom_call.1} parent=87 // pred_fallthru
          _
        // Predicated region
        $region101: #{tpu_custom_call.1} parent=87 // pred_check
          %p746 = pneg %p144
        $region102: #{tpu_custom_call.1} parent=87 // pred_check_branch
          %748 = sbr.rel (%p746) target = $region104
        $region103: #{tpu_custom_call.1} parent=87 // pred_region
          %749 = dma.done [#allocation11], 512
        $region104: #{tpu_custom_call.1} parent=87 // pred_fallthru
          _
        // Predicated region
        $region105: #{tpu_custom_call.1} parent=87 // pred_check
          %p750 = pneg %p165
        $region106: #{tpu_custom_call.1} parent=87 // pred_check_branch
          %752 = sbr.rel (%p750) target = $region108
        $region107: #{tpu_custom_call.1} parent=87 // pred_region
          %753 = dma.done [#allocation11], 512
        $region108: #{tpu_custom_call.1} parent=87 // pred_fallthru
          _
        // Predicated region
        $region109: #{tpu_custom_call.1} parent=87 // pred_check
          %p754 = pneg %p186
        $region110: #{tpu_custom_call.1} parent=87 // pred_check_branch
          %756 = sbr.rel (%p754) target = $region112
        $region111: #{tpu_custom_call.1} parent=87 // pred_region
          %757 = dma.done [#allocation14], 512
        $region112: #{tpu_custom_call.1} parent=87 // pred_fallthru
          _
        // Predicated region
        $region113: #{tpu_custom_call.1} parent=87 // pred_check
          %p758 = pneg %p207
        $region114: #{tpu_custom_call.1} parent=87 // pred_check_branch
          %760 = sbr.rel (%p758) target = $region116
        $region115: #{tpu_custom_call.1} parent=87 // pred_region
          %761 = dma.done [#allocation14], 16
        $region116: #{tpu_custom_call.1} parent=87 // pred_fallthru
          _
        // Predicated region
        $region117: #{tpu_custom_call.1} parent=87 // pred_check
          %p762 = pneg %p228
        $region118: #{tpu_custom_call.1} parent=87 // pred_check_branch
          %764 = sbr.rel (%p762) target = $region120
        $region119: #{tpu_custom_call.1} parent=87 // pred_region
          %765 = dma.done [#allocation17], 16
        $region120: #{tpu_custom_call.1} parent=87 // pred_fallthru
          _
        // Predicated region
        $region121: #{tpu_custom_call.1} parent=87 // pred_check
          %p766 = pneg %p249
        $region122: #{tpu_custom_call.1} parent=87 // pred_check_branch
          %768 = sbr.rel (%p766) target = $region124
        $region123: #{tpu_custom_call.1} parent=87 // pred_region
          %769 = dma.done [#allocation17], 16
        $region124: #{tpu_custom_call.1} parent=87 // pred_fallthru
          _
        // Predicated region
        $region125: #{tpu_custom_call.1} parent=87 // pred_check
          %p770 = pneg %p270
        $region126: #{tpu_custom_call.1} parent=87 // pred_check_branch
          %772 = sbr.rel (%p770) target = $region128
        $region127: #{tpu_custom_call.1} parent=87 // pred_region
          %773 = dma.done [#allocation20], 512
        $region128: #{tpu_custom_call.1} parent=87 // pred_fallthru
          _
        // Predicated region
        $region129: #{tpu_custom_call.1} parent=87 // pred_check
          %p774 = pneg %p291
        $region130: #{tpu_custom_call.1} parent=87 // pred_check_branch
          %776 = sbr.rel (%p774) target = $region132
        $region131: #{tpu_custom_call.1} parent=87 // pred_region
          %777 = dma.done [#allocation20], 16
        $region132: #{tpu_custom_call.1} parent=87 // pred_fallthru
          _
        // Predicated region
        $region133: #{tpu_custom_call.1} parent=87 // pred_check
          %p778 = pneg %p312
        $region134: #{tpu_custom_call.1} parent=87 // pred_check_branch
          %780 = sbr.rel (%p778) target = $region136
        $region135: #{tpu_custom_call.1} parent=87 // pred_region
          %781 = dma.done [#allocation23], 16
        $region136: #{tpu_custom_call.1} parent=87 // pred_fallthru
          _
        // Predicated region
        $region137: #{tpu_custom_call.1} parent=87 // pred_check
          %p782 = pneg %p333
        $region138: #{tpu_custom_call.1} parent=87 // pred_check_branch
          %784 = sbr.rel (%p782) target = $region140
        $region139: #{tpu_custom_call.1} parent=87 // pred_region
          %785 = dma.done [#allocation23], 16
        $region140: #{tpu_custom_call.1} parent=87 // pred_fallthru
          _
        // Predicated region
        $region141: #{tpu_custom_call.1} parent=87 // pred_check
          %p786 = pneg %p354
        $region142: #{tpu_custom_call.1} parent=87 // pred_check_branch
          %788 = sbr.rel (%p786) target = $region144
        $region143: #{tpu_custom_call.1} parent=87 // pred_region
          %789 = dma.done [#allocation26], 512
        $region144: #{tpu_custom_call.1} parent=87 // pred_fallthru
          _
        // Predicated region
        $region145: #{tpu_custom_call.1} parent=87 // pred_check
          %p790 = pneg %p375
        $region146: #{tpu_custom_call.1} parent=87 // pred_check_branch
          %792 = sbr.rel (%p790) target = $region148
        $region147: #{tpu_custom_call.1} parent=87 // pred_region
          %793 = dma.done [#allocation26], 16
        $region148: #{tpu_custom_call.1} parent=87 // pred_fallthru
          _
        // Predicated region
        $region149: #{tpu_custom_call.1} parent=87 // pred_check
          %p794 = pneg %p396
        $region150: #{tpu_custom_call.1} parent=87 // pred_check_branch
          %796 = sbr.rel (%p794) target = $region152
        $region151: #{tpu_custom_call.1} parent=87 // pred_region
          %797 = dma.done [#allocation29], 2048
        $region152: #{tpu_custom_call.1} parent=87 // pred_fallthru
          _
        // Predicated region
        $region153: #{tpu_custom_call.1} parent=87 // pred_check
          %p798 = pneg %p417
        $region154: #{tpu_custom_call.1} parent=87 // pred_check_branch
          %800 = sbr.rel (%p798) target = $region156
        $region155: #{tpu_custom_call.1} parent=87 // pred_region
          %801 = dma.done [#allocation29], 16
        $region156: #{tpu_custom_call.1} parent=87 // pred_fallthru
          _
        %s802 = sand.u32 %s68, 1
        %s803 = scalar_lea.sflag [#allocation5], %s802
        %s804 = sand.u32 %s68, 1
        %s805 = smul.addr %s804, 8
        %s806 = scalar_lea.vmem [#allocation4], %s805
        %p807 = pneg %p81
        %p808 = pneg %p78
        %p809 = pneg %p102
        %p810 = pneg %p99
        %p811 = pneg %p123
        %p812 = pneg %p120
        %p813 = pneg %p144
        %p814 = pneg %p141
        %p815 = pneg %p165
        %p816 = pneg %p162
        %p817 = pneg %p186
        %p818 = pneg %p183
        %p819 = pneg %p207
        %p820 = pneg %p204
        %p821 = pneg %p228
        %p822 = pneg %p225
        %p823 = pneg %p249
        %p824 = pneg %p246
        %p825 = pneg %p270
        %p826 = pneg %p267
        %p827 = pneg %p291
        %p828 = pneg %p288
        %p829 = pneg %p312
        %p830 = pneg %p309
        %p831 = pneg %p333
        %p832 = pneg %p330
        %p833 = pneg %p354
        %p834 = pneg %p351
        %p835 = pneg %p375
        %p836 = pneg %p372
        %p837 = pneg %p396
        %p838 = pneg %p393
        %p839 = pneg %p417
        %p840 = pneg %p414
        %p841 = pneg %p445
        %p842 = pneg %p442
        %s843 = sand.u32 %s432, 1
        %s844 = scalar_lea.sflag [#allocation6], %s843
        %s845 = sand.u32 %s432, 1
        %s846 = smul.addr %s845, 8
        %s847 = scalar_lea.vmem [#allocation31], %s846
        %p848 = pneg %p471
        %p849 = pneg %p468
        %s850 = sand.u32 %s48, 1
        %s851 = scalar_lea.sflag [#allocation33], %s850
        %s852 = sand.u32 %s458, 1
        %s853 = smul.addr %s852, 8
        %s854 = scalar_lea.vmem [#allocation32], %s853
        %p855 = pneg %p497
        %p856 = pneg %p494
        %s857 = sand.u32 %s48, 1
        %s858 = scalar_lea.sflag [#allocation33], %s857
        %s859 = sand.u32 %s484, 1
        %s860 = smul.addr %s859, 8
        %s861 = scalar_lea.vmem [#allocation34], %s860
        %p862 = scmp.eq.s32.totalorder %s53, 0
        // Predicated region
        $region157: #{tpu_custom_call.1} parent=87 // pred_check
          %p863 = pneg %p862
        $region158: #{tpu_custom_call.1} parent=87 // pred_check_branch
          %865 = sbr.rel (%p863) target = $region160
        $region159: #{tpu_custom_call.1} parent=87 // pred_region
          %v866 = vld [vmem:[%s733] sm:$0xff]
          %v867 = vld [vmem:[#allocation7] sm:$0x1]
          %v868 = vld [vmem:[#allocation9] sm:$0x1]
          %vm869 = vcmask 261120
          %v870 = vsel %vm869, %v866, 0.0
          %871 = vadd.xlane.f32.xlu0 %v870
          %v872 = vpop.xlane.xlu0 %871
          %v873 = vrcp.pop 32.0
          %v874 = vmul.f32 %v872, %v873
          %v875 = vsub.f32 %v866, %v874
          %v876 = vmul.f32 %v875, %v875
          %v877 = vsel %vm869, %v876, 0.0
          %878 = vadd.xlane.f32.xlu0 %v877
          %v879 = vpop.xlane.xlu0 %878
          %v880 = vmul.f32 %v879, %v873
          %v881 = vadd.f32 %v880, 1e-05
          %v882 = vrsqrt.pop %v881
          %v883 = vmul.f32 %v881, %v882
          %vm884 = vcmp.eq.f32.partialorder %v881, inf
          %v885 = vsel %vm884, %v881, %v883
          %vm886 = vcmp.eq.f32.partialorder %v881, 0.0
          %v887 = vand.u32 %v881, 2147483648
          %v888 = vsel %vm886, %v887, %v885
          %v889 = vrcp.pop %v888
          %v890 = vmul.f32 %v875, %v889
          %v892 = vlaneseq
          %v893 = vshrl.u32 %v892, 7
          %v894 = vsub.s32 0, %v893
          %v895 = vrot.slane %v867, %v894
          %v897 = vmul.f32 %v895, %v890
          %v899 = vlaneseq
          %v900 = vshrl.u32 %v899, 7
          %v901 = vsub.s32 0, %v900
          %v902 = vrot.slane %v868, %v901
          %v904 = vadd.f32 %v897, %v902
          %v905 = vld [vmem:[#allocation12] sm:$0xff]
          %v906 = vld [vmem:[#allocation12 + $0x8] sm:$0xff]
          %v907 = vld [vmem:[#allocation12 + $0x10] sm:$0xff]
          %v908 = vld [vmem:[#allocation12 + $0x18] sm:$0xff]
          %v909 = vld [vmem:[#allocation16] sm:$0x1]
          %v911 = vlaneseq
          %v912 = vshrl.u32 %v911, 7
          %v913 = vsub.s32 0, %v912
          %v914 = vrot.slane %v909, %v913
          %v917 = vsel %vm869, %v904, 0
          %919 = vmatprep.subr.mxu0 0.0
          %920 = vmatpush1.msra.mxu0 %v905
          %921 = vmatprep.subr.mxu0 0.0
          %922 = vmatpush1.msra.mxu0 %v906
          %923 = vmatprep.subr.mxu0 0.0
          %924 = vmatpush1.msra.mxu0 %v907
          %925 = vmatprep.subr.mxu0 0.0
          %926 = vmatpush1.msra.mxu0 %v908
          %927 = vmatprep.subr.mxu0 0.0
          %928 = vmatpush1.msra.mxu0 0.0
          %929 = vmatprep.subr.mxu0 0.0
          %930 = vmatpush1.msra.mxu0 0.0
          %931 = vmatprep.subr.mxu0 0.0
          %932 = vmatpush1.msra.mxu0 0.0
          %933 = vmatprep.subr.mxu0 0.0
          %934 = vmatpush1.msra.mxu0 0.0
          %935 = vmatprep.subr.mxu0 0.0
          %936 = vmatpush1.msra.mxu0 0.0
          %937 = vmatprep.subr.mxu0 0.0
          %938 = vmatpush1.msra.mxu0 0.0
          %939 = vmatprep.subr.mxu0 0.0
          %940 = vmatpush1.msra.mxu0 0.0
          %941 = vmatprep.subr.mxu0 0.0
          %942 = vmatpush1.msra.mxu0 0.0
          %943 = vmatprep.subr.mxu0 0.0
          %944 = vmatpush1.msra.mxu0 0.0
          %945 = vmatprep.subr.mxu0 0.0
          %946 = vmatpush1.msra.mxu0 0.0
          %947 = vmatprep.subr.mxu0 0.0
          %948 = vmatpush1.msra.mxu0 0.0
          %949 = vmatprep.subr.mxu0 0.0
          %950 = vmatpush1.msra.mxu0 0.0
          %951 = vmatprep.subr.mxu0 0.0
          %952 = vmatpush1.msra.mxu0 0.0
          %953 = vmatprep.subr.mxu0 0.0
          %954 = vmatpush1.msra.mxu0 0.0
          %955 = vmatprep.subr.mxu0 0.0
          %956 = vmatpush1.msra.mxu0 0.0
          %957 = vmatprep.subr.mxu0 0.0
          %958 = vmatpush1.msra.mxu0 0.0
          %959 = vmatprep.subr.mxu0 0.0
          %960 = vmatpush1.msra.mxu0 0.0
          %961 = vmatprep.subr.mxu0 0.0
          %962 = vmatpush1.msra.mxu0 0.0
          %963 = vmatprep.subr.mxu0 0.0
          %964 = vmatpush1.msra.mxu0 0.0
          %965 = vmatprep.subr.mxu0 0.0
          %966 = vmatpush1.msra.mxu0 0.0
          %967 = vmatprep.subr.mxu0 0.0
          %968 = vmatpush1.msra.mxu0 0.0
          %969 = vmatprep.subr.mxu0 0.0
          %970 = vmatpush1.msra.mxu0 0.0
          %971 = vmatprep.subr.mxu0 0.0
          %972 = vmatpush1.msra.mxu0 0.0
          %973 = vmatprep.subr.mxu0 0.0
          %974 = vmatpush1.msra.mxu0 0.0
          %975 = vmatprep.subr.mxu0 0.0
          %976 = vmatpush1.msra.mxu0 0.0
          %977 = vmatprep.subr.mxu0 0.0
          %978 = vmatpush1.msra.mxu0 0.0
          %979 = vmatprep.subr.mxu0 0.0
          %980 = vmatpush1.msra.mxu0 0.0
          %981 = vmatprep.subr.mxu0 0.0
          %982 = vmatpush1.msra.mxu0 0.0
          %983 = vmatprep.mubr.f32.mxu0 0.0
          %984 = vmatmul.mubr.f32.gmra.mrb[0].mxu0 %v917
          %v985 = vpop.f32.mrb[0].mxu0
          %v986 = vadd.f32 %v914, %v985
          %v987 = vpop.f32.mrb[0].mxu0
          %988 = vdwg.mxu0
          %v989 = vld [vmem:[#allocation13] sm:$0xff]
          %v990 = vld [vmem:[#allocation13 + $0x8] sm:$0xff]
          %v991 = vld [vmem:[#allocation13 + $0x10] sm:$0xff]
          %v992 = vld [vmem:[#allocation13 + $0x18] sm:$0xff]
          %v993 = vld [vmem:[#allocation18] sm:$0x1]
          %v995 = vlaneseq
          %v996 = vshrl.u32 %v995, 7
          %v997 = vsub.s32 0, %v996
          %v998 = vrot.slane %v993, %v997
          %1000 = vmatprep.subr.mxu0 0.0
          %1001 = vmatpush1.msra.mxu0 %v989
          %1002 = vmatprep.subr.mxu0 0.0
          %1003 = vmatpush1.msra.mxu0 %v990
          %1004 = vmatprep.subr.mxu0 0.0
          %1005 = vmatpush1.msra.mxu0 %v991
          %1006 = vmatprep.subr.mxu0 0.0
          %1007 = vmatpush1.msra.mxu0 %v992
          %1008 = vmatprep.subr.mxu0 0.0
          %1009 = vmatpush1.msra.mxu0 0.0
          %1010 = vmatprep.subr.mxu0 0.0
          %1011 = vmatpush1.msra.mxu0 0.0
          %1012 = vmatprep.subr.mxu0 0.0
          %1013 = vmatpush1.msra.mxu0 0.0
          %1014 = vmatprep.subr.mxu0 0.0
          %1015 = vmatpush1.msra.mxu0 0.0
          %1016 = vmatprep.subr.mxu0 0.0
          %1017 = vmatpush1.msra.mxu0 0.0
          %1018 = vmatprep.subr.mxu0 0.0
          %1019 = vmatpush1.msra.mxu0 0.0
          %1020 = vmatprep.subr.mxu0 0.0
          %1021 = vmatpush1.msra.mxu0 0.0
          %1022 = vmatprep.subr.mxu0 0.0
          %1023 = vmatpush1.msra.mxu0 0.0
          %1024 = vmatprep.subr.mxu0 0.0
          %1025 = vmatpush1.msra.mxu0 0.0
          %1026 = vmatprep.subr.mxu0 0.0
          %1027 = vmatpush1.msra.mxu0 0.0
          %1028 = vmatprep.subr.mxu0 0.0
          %1029 = vmatpush1.msra.mxu0 0.0
          %1030 = vmatprep.subr.mxu0 0.0
          %1031 = vmatpush1.msra.mxu0 0.0
          %1032 = vmatprep.subr.mxu0 0.0
          %1033 = vmatpush1.msra.mxu0 0.0
          %1034 = vmatprep.subr.mxu0 0.0
          %1035 = vmatpush1.msra.mxu0 0.0
          %1036 = vmatprep.subr.mxu0 0.0
          %1037 = vmatpush1.msra.mxu0 0.0
          %1038 = vmatprep.subr.mxu0 0.0
          %1039 = vmatpush1.msra.mxu0 0.0
          %1040 = vmatprep.subr.mxu0 0.0
          %1041 = vmatpush1.msra.mxu0 0.0
          %1042 = vmatprep.subr.mxu0 0.0
          %1043 = vmatpush1.msra.mxu0 0.0
          %1044 = vmatprep.subr.mxu0 0.0
          %1045 = vmatpush1.msra.mxu0 0.0
          %1046 = vmatprep.subr.mxu0 0.0
          %1047 = vmatpush1.msra.mxu0 0.0
          %1048 = vmatprep.subr.mxu0 0.0
          %1049 = vmatpush1.msra.mxu0 0.0
          %1050 = vmatprep.subr.mxu0 0.0
          %1051 = vmatpush1.msra.mxu0 0.0
          %1052 = vmatprep.subr.mxu0 0.0
          %1053 = vmatpush1.msra.mxu0 0.0
          %1054 = vmatprep.subr.mxu0 0.0
          %1055 = vmatpush1.msra.mxu0 0.0
          %1056 = vmatprep.subr.mxu0 0.0
          %1057 = vmatpush1.msra.mxu0 0.0
          %1058 = vmatprep.subr.mxu0 0.0
          %1059 = vmatpush1.msra.mxu0 0.0
          %1060 = vmatprep.subr.mxu0 0.0
          %1061 = vmatpush1.msra.mxu0 0.0
          %1062 = vmatprep.subr.mxu0 0.0
          %1063 = vmatpush1.msra.mxu0 0.0
          %1064 = vmatprep.mubr.f32.mxu0 0.0
          %1065 = vmatmul.mubr.f32.gmra.mrb[0].mxu0 %v917
          %v1066 = vpop.f32.mrb[0].mxu0
          %v1067 = vadd.f32 %v998, %v1066
          %v1068 = vpop.f32.mrb[0].mxu0
          %1069 = vdwg.mxu0
          %1070 = vst.msk [vmem:[%s854] sm:$0xff] %vm869, %v986
          %1071 = vst.msk [vmem:[%s861] sm:$0xff] %vm869, %v1067
          %1073 = vrot.lane.b32.xlu0 %v986, 120
          %v1074 = vpop.permute.xlu0 %1073
          %1076 = vrot.lane.b32.xlu0 %v986, 112
          %v1077 = vpop.permute.xlu0 %1076
          %1079 = vrot.lane.b32.xlu0 %v986, 104
          %v1080 = vpop.permute.xlu0 %1079
          %vm1082 = vcmask 64512
          %1083 = vst.msk [vmem:[#allocation2] sm:$0xff] %vm1082, %v986
          %1084 = vst.msk [vmem:[#allocation2 + $0x8] sm:$0xff] %vm1082, %v1074
          %1085 = vst.msk [vmem:[#allocation2 + $0x10] sm:$0xff] %vm1082, %v1077
          %1086 = vst.msk [vmem:[#allocation2 + $0x18] sm:$0xff] %vm1082, %v1080
          %1088 = vrot.lane.b32.xlu0 %v1067, 120
          %v1089 = vpop.permute.xlu0 %1088
          %1091 = vrot.lane.b32.xlu0 %v1067, 112
          %v1092 = vpop.permute.xlu0 %1091
          %1094 = vrot.lane.b32.xlu0 %v1067, 104
          %v1095 = vpop.permute.xlu0 %1094
          %1097 = vst.msk [vmem:[#allocation3] sm:$0xff] %vm1082, %v1067
          %1098 = vst.msk [vmem:[#allocation3 + $0x8] sm:$0xff] %vm1082, %v1089
          %1099 = vst.msk [vmem:[#allocation3 + $0x10] sm:$0xff] %vm1082, %v1092
          %1100 = vst.msk [vmem:[#allocation3 + $0x18] sm:$0xff] %vm1082, %v1095
        $region160: #{tpu_custom_call.1} parent=87 // pred_fallthru
          _
        %s1101 = smul.u32 %s53, 8
        %s1102 = scalar_lea.vmem %s733, %s1101 [#allocation4]
        %v1103 = vld [vmem:[%s1102] sm:$0xff]
        %v1104 = vld [vmem:[#allocation7] sm:$0x1]
        %v1105 = vld [vmem:[#allocation9] sm:$0x1]
        %vm1106 = vcmask 261120
        %v1107 = vsel %vm1106, %v1103, 0.0
        %1108 = vadd.xlane.f32.xlu0 %v1107
        %v1109 = vpop.xlane.xlu0 %1108
        %v1110 = vrcp.pop 32.0
        %v1111 = vmul.f32 %v1109, %v1110
        %v1112 = vsub.f32 %v1103, %v1111
        %v1113 = vmul.f32 %v1112, %v1112
        %v1114 = vsel %vm1106, %v1113, 0.0
        %1115 = vadd.xlane.f32.xlu0 %v1114
        %v1116 = vpop.xlane.xlu0 %1115
        %v1117 = vmul.f32 %v1116, %v1110
        %v1118 = vadd.f32 %v1117, 1e-05
        %v1119 = vrsqrt.pop %v1118
        %v1120 = vmul.f32 %v1118, %v1119
        %vm1121 = vcmp.eq.f32.partialorder %v1118, inf
        %v1122 = vsel %vm1121, %v1118, %v1120
        %vm1123 = vcmp.eq.f32.partialorder %v1118, 0.0
        %v1124 = vand.u32 %v1118, 2147483648
        %v1125 = vsel %vm1123, %v1124, %v1122
        %v1126 = vrcp.pop %v1125
        %v1127 = vmul.f32 %v1112, %v1126
        %v1129 = vlaneseq
        %v1130 = vshrl.u32 %v1129, 7
        %v1131 = vsub.s32 0, %v1130
        %v1132 = vrot.slane %v1104, %v1131
        %v1134 = vmul.f32 %v1132, %v1127
        %v1136 = vlaneseq
        %v1137 = vshrl.u32 %v1136, 7
        %v1138 = vsub.s32 0, %v1137
        %v1139 = vrot.slane %v1105, %v1138
        %v1141 = vadd.f32 %v1134, %v1139
        %v1142 = vld [vmem:[#allocation10] sm:$0xff]
        %v1143 = vld [vmem:[#allocation10 + $0x8] sm:$0xff]
        %v1144 = vld [vmem:[#allocation10 + $0x10] sm:$0xff]
        %v1145 = vld [vmem:[#allocation10 + $0x18] sm:$0xff]
        %v1146 = vld [vmem:[#allocation15] sm:$0x1]
        %v1148 = vlaneseq
        %v1149 = vshrl.u32 %v1148, 7
        %v1150 = vsub.s32 0, %v1149
        %v1151 = vrot.slane %v1146, %v1150
        %v1154 = vsel %vm1106, %v1141, 0
        %1156 = vmatprep.subr.mxu0 0.0
        %1157 = vmatpush1.msra.mxu0 %v1142
        %1158 = vmatprep.subr.mxu0 0.0
        %1159 = vmatpush1.msra.mxu0 %v1143
        %1160 = vmatprep.subr.mxu0 0.0
        %1161 = vmatpush1.msra.mxu0 %v1144
        %1162 = vmatprep.subr.mxu0 0.0
        %1163 = vmatpush1.msra.mxu0 %v1145
        %1164 = vmatprep.subr.mxu0 0.0
        %1165 = vmatpush1.msra.mxu0 0.0
        %1166 = vmatprep.subr.mxu0 0.0
        %1167 = vmatpush1.msra.mxu0 0.0
        %1168 = vmatprep.subr.mxu0 0.0
        %1169 = vmatpush1.msra.mxu0 0.0
        %1170 = vmatprep.subr.mxu0 0.0
        %1171 = vmatpush1.msra.mxu0 0.0
        %1172 = vmatprep.subr.mxu0 0.0
        %1173 = vmatpush1.msra.mxu0 0.0
        %1174 = vmatprep.subr.mxu0 0.0
        %1175 = vmatpush1.msra.mxu0 0.0
        %1176 = vmatprep.subr.mxu0 0.0
        %1177 = vmatpush1.msra.mxu0 0.0
        %1178 = vmatprep.subr.mxu0 0.0
        %1179 = vmatpush1.msra.mxu0 0.0
        %1180 = vmatprep.subr.mxu0 0.0
        %1181 = vmatpush1.msra.mxu0 0.0
        %1182 = vmatprep.subr.mxu0 0.0
        %1183 = vmatpush1.msra.mxu0 0.0
        %1184 = vmatprep.subr.mxu0 0.0
        %1185 = vmatpush1.msra.mxu0 0.0
        %1186 = vmatprep.subr.mxu0 0.0
        %1187 = vmatpush1.msra.mxu0 0.0
        %1188 = vmatprep.subr.mxu0 0.0
        %1189 = vmatpush1.msra.mxu0 0.0
        %1190 = vmatprep.subr.mxu0 0.0
        %1191 = vmatpush1.msra.mxu0 0.0
        %1192 = vmatprep.subr.mxu0 0.0
        %1193 = vmatpush1.msra.mxu0 0.0
        %1194 = vmatprep.subr.mxu0 0.0
        %1195 = vmatpush1.msra.mxu0 0.0
        %1196 = vmatprep.subr.mxu0 0.0
        %1197 = vmatpush1.msra.mxu0 0.0
        %1198 = vmatprep.subr.mxu0 0.0
        %1199 = vmatpush1.msra.mxu0 0.0
        %1200 = vmatprep.subr.mxu0 0.0
        %1201 = vmatpush1.msra.mxu0 0.0
        %1202 = vmatprep.subr.mxu0 0.0
        %1203 = vmatpush1.msra.mxu0 0.0
        %1204 = vmatprep.subr.mxu0 0.0
        %1205 = vmatpush1.msra.mxu0 0.0
        %1206 = vmatprep.subr.mxu0 0.0
        %1207 = vmatpush1.msra.mxu0 0.0
        %1208 = vmatprep.subr.mxu0 0.0
        %1209 = vmatpush1.msra.mxu0 0.0
        %1210 = vmatprep.subr.mxu0 0.0
        %1211 = vmatpush1.msra.mxu0 0.0
        %1212 = vmatprep.subr.mxu0 0.0
        %1213 = vmatpush1.msra.mxu0 0.0
        %1214 = vmatprep.subr.mxu0 0.0
        %1215 = vmatpush1.msra.mxu0 0.0
        %1216 = vmatprep.subr.mxu0 0.0
        %1217 = vmatpush1.msra.mxu0 0.0
        %1218 = vmatprep.subr.mxu0 0.0
        %1219 = vmatpush1.msra.mxu0 0.0
        %1220 = vmatprep.mubr.f32.mxu0 0.0
        %1221 = vmatmul.mubr.f32.gmra.mrb[0].mxu0 %v1154
        %v1222 = vpop.f32.mrb[0].mxu0
        %v1223 = vadd.f32 %v1151, %v1222
        %v1224 = vpop.f32.mrb[0].mxu0
        %1225 = vdwg.mxu0
        %1227 = vrot.lane.b32.xlu0 %v1223, 120
        %v1228 = vpop.permute.xlu0 %1227
        %1229 = vrot.lane.b32.xlu0 %v1223, 112
        %v1230 = vpop.permute.xlu0 %1229
        %1231 = vrot.lane.b32.xlu0 %v1223, 104
        %v1232 = vpop.permute.xlu0 %1231
        %v1233 = vld [vmem:[#allocation2] sm:$0xff]
        %v1234 = vld [vmem:[#allocation2 + $0x8] sm:$0xff]
        %v1235 = vld [vmem:[#allocation2 + $0x10] sm:$0xff]
        %v1236 = vld [vmem:[#allocation2 + $0x18] sm:$0xff]
        %vm1237 = vcmask 64512
        %v1238 = vsel %vm1237, %v1223, 0
        %v1241 = vsel %vm1237, %v1233, 0
        %1243 = vmatprep.subr.mxu0 0.0
        %1244 = vmatpush1.xpose.msra.mxu0 %v1241
        %1245 = vmatprep.subr.mxu0 0.0
        %1246 = vmatpush1.xpose.msra.mxu0 0.0
        %1247 = vmatprep.subr.mxu0 0.0
        %1248 = vmatpush1.xpose.msra.mxu0 0.0
        %1249 = vmatprep.subr.mxu0 0.0
        %1250 = vmatpush1.xpose.msra.mxu0 0.0
        %1251 = vmatprep.subr.mxu0 0.0
        %1252 = vmatpush1.xpose.msra.mxu0 0.0
        %1253 = vmatprep.subr.mxu0 0.0
        %1254 = vmatpush1.xpose.msra.mxu0 0.0
        %1255 = vmatprep.subr.mxu0 0.0
        %1256 = vmatpush1.xpose.msra.mxu0 0.0
        %1257 = vmatprep.subr.mxu0 0.0
        %1258 = vmatpush1.xpose.msra.mxu0 0.0
        %1259 = vmatprep.subr.mxu0 0.0
        %1260 = vmatpush1.xpose.msra.mxu0 0.0
        %1261 = vmatprep.subr.mxu0 0.0
        %1262 = vmatpush1.xpose.msra.mxu0 0.0
        %1263 = vmatprep.subr.mxu0 0.0
        %1264 = vmatpush1.xpose.msra.mxu0 0.0
        %1265 = vmatprep.subr.mxu0 0.0
        %1266 = vmatpush1.xpose.msra.mxu0 0.0
        %1267 = vmatprep.subr.mxu0 0.0
        %1268 = vmatpush1.xpose.msra.mxu0 0.0
        %1269 = vmatprep.subr.mxu0 0.0
        %1270 = vmatpush1.xpose.msra.mxu0 0.0
        %1271 = vmatprep.subr.mxu0 0.0
        %1272 = vmatpush1.xpose.msra.mxu0 0.0
        %1273 = vmatprep.subr.mxu0 0.0
        %1274 = vmatpush1.xpose.msra.mxu0 0.0
        %1275 = vmatprep.subr.mxu0 0.0
        %1276 = vmatpush1.xpose.msra.mxu0 0.0
        %1277 = vmatprep.subr.mxu0 0.0
        %1278 = vmatpush1.xpose.msra.mxu0 0.0
        %1279 = vmatprep.subr.mxu0 0.0
        %1280 = vmatpush1.xpose.msra.mxu0 0.0
        %1281 = vmatprep.subr.mxu0 0.0
        %1282 = vmatpush1.xpose.msra.mxu0 0.0
        %1283 = vmatprep.subr.mxu0 0.0
        %1284 = vmatpush1.xpose.msra.mxu0 0.0
        %1285 = vmatprep.subr.mxu0 0.0
        %1286 = vmatpush1.xpose.msra.mxu0 0.0
        %1287 = vmatprep.subr.mxu0 0.0
        %1288 = vmatpush1.xpose.msra.mxu0 0.0
        %1289 = vmatprep.subr.mxu0 0.0
        %1290 = vmatpush1.xpose.msra.mxu0 0.0
        %1291 = vmatprep.subr.mxu0 0.0
        %1292 = vmatpush1.xpose.msra.mxu0 0.0
        %1293 = vmatprep.subr.mxu0 0.0
        %1294 = vmatpush1.xpose.msra.mxu0 0.0
        %1295 = vmatprep.subr.mxu0 0.0
        %1296 = vmatpush1.xpose.msra.mxu0 0.0
        %1297 = vmatprep.subr.mxu0 0.0
        %1298 = vmatpush1.xpose.msra.mxu0 0.0
        %1299 = vmatprep.subr.mxu0 0.0
        %1300 = vmatpush1.xpose.msra.mxu0 0.0
        %1301 = vmatprep.subr.mxu0 0.0
        %1302 = vmatpush1.xpose.msra.mxu0 0.0
        %1303 = vmatprep.subr.mxu0 0.0
        %1304 = vmatpush1.xpose.msra.mxu0 0.0
        %1305 = vmatprep.subr.mxu0 0.0
        %1306 = vmatpush1.xpose.msra.mxu0 0.0
        %1307 = vmatprep.mubr.f32.mxu0 0.0
        %1308 = vmatmul.mubr.f32.gmra.mrb[0].mxu0 %v1238
        %v1309 = vpop.f32.mrb[0].mxu0
        %v1310 = vadd.f32 0.0, %v1309
        %v1311 = vpop.f32.mrb[0].mxu0
        %1312 = vdwg.mxu0
        %v1313 = vsel %vm1237, %v1228, 0
        %v1316 = vsel %vm1237, %v1234, 0
        %1318 = vmatprep.subr.mxu0 0.0
        %1319 = vmatpush1.xpose.msra.mxu0 %v1316
        %1320 = vmatprep.subr.mxu0 0.0
        %1321 = vmatpush1.xpose.msra.mxu0 0.0
        %1322 = vmatprep.subr.mxu0 0.0
        %1323 = vmatpush1.xpose.msra.mxu0 0.0
        %1324 = vmatprep.subr.mxu0 0.0
        %1325 = vmatpush1.xpose.msra.mxu0 0.0
        %1326 = vmatprep.subr.mxu0 0.0
        %1327 = vmatpush1.xpose.msra.mxu0 0.0
        %1328 = vmatprep.subr.mxu0 0.0
        %1329 = vmatpush1.xpose.msra.mxu0 0.0
        %1330 = vmatprep.subr.mxu0 0.0
        %1331 = vmatpush1.xpose.msra.mxu0 0.0
        %1332 = vmatprep.subr.mxu0 0.0
        %1333 = vmatpush1.xpose.msra.mxu0 0.0
        %1334 = vmatprep.subr.mxu0 0.0
        %1335 = vmatpush1.xpose.msra.mxu0 0.0
        %1336 = vmatprep.subr.mxu0 0.0
        %1337 = vmatpush1.xpose.msra.mxu0 0.0
        %1338 = vmatprep.subr.mxu0 0.0
        %1339 = vmatpush1.xpose.msra.mxu0 0.0
        %1340 = vmatprep.subr.mxu0 0.0
        %1341 = vmatpush1.xpose.msra.mxu0 0.0
        %1342 = vmatprep.subr.mxu0 0.0
        %1343 = vmatpush1.xpose.msra.mxu0 0.0
        %1344 = vmatprep.subr.mxu0 0.0
        %1345 = vmatpush1.xpose.msra.mxu0 0.0
        %1346 = vmatprep.subr.mxu0 0.0
        %1347 = vmatpush1.xpose.msra.mxu0 0.0
        %1348 = vmatprep.subr.mxu0 0.0
        %1349 = vmatpush1.xpose.msra.mxu0 0.0
        %1350 = vmatprep.subr.mxu0 0.0
        %1351 = vmatpush1.xpose.msra.mxu0 0.0
        %1352 = vmatprep.subr.mxu0 0.0
        %1353 = vmatpush1.xpose.msra.mxu0 0.0
        %1354 = vmatprep.subr.mxu0 0.0
        %1355 = vmatpush1.xpose.msra.mxu0 0.0
        %1356 = vmatprep.subr.mxu0 0.0
        %1357 = vmatpush1.xpose.msra.mxu0 0.0
        %1358 = vmatprep.subr.mxu0 0.0
        %1359 = vmatpush1.xpose.msra.mxu0 0.0
        %1360 = vmatprep.subr.mxu0 0.0
        %1361 = vmatpush1.xpose.msra.mxu0 0.0
        %1362 = vmatprep.subr.mxu0 0.0
        %1363 = vmatpush1.xpose.msra.mxu0 0.0
        %1364 = vmatprep.subr.mxu0 0.0
        %1365 = vmatpush1.xpose.msra.mxu0 0.0
        %1366 = vmatprep.subr.mxu0 0.0
        %1367 = vmatpush1.xpose.msra.mxu0 0.0
        %1368 = vmatprep.subr.mxu0 0.0
        %1369 = vmatpush1.xpose.msra.mxu0 0.0
        %1370 = vmatprep.subr.mxu0 0.0
        %1371 = vmatpush1.xpose.msra.mxu0 0.0
        %1372 = vmatprep.subr.mxu0 0.0
        %1373 = vmatpush1.xpose.msra.mxu0 0.0
        %1374 = vmatprep.subr.mxu0 0.0
        %1375 = vmatpush1.xpose.msra.mxu0 0.0
        %1376 = vmatprep.subr.mxu0 0.0
        %1377 = vmatpush1.xpose.msra.mxu0 0.0
        %1378 = vmatprep.subr.mxu0 0.0
        %1379 = vmatpush1.xpose.msra.mxu0 0.0
        %1380 = vmatprep.subr.mxu0 0.0
        %1381 = vmatpush1.xpose.msra.mxu0 0.0
        %1382 = vmatprep.mubr.f32.mxu0 0.0
        %1383 = vmatmul.mubr.f32.gmra.mrb[0].mxu0 %v1313
        %v1384 = vpop.f32.mrb[0].mxu0
        %v1385 = vadd.f32 0.0, %v1384
        %v1386 = vpop.f32.mrb[0].mxu0
        %1387 = vdwg.mxu0
        %v1388 = vsel %vm1237, %v1230, 0
        %v1391 = vsel %vm1237, %v1235, 0
        %1393 = vmatprep.subr.mxu0 0.0
        %1394 = vmatpush1.xpose.msra.mxu0 %v1391
        %1395 = vmatprep.subr.mxu0 0.0
        %1396 = vmatpush1.xpose.msra.mxu0 0.0
        %1397 = vmatprep.subr.mxu0 0.0
        %1398 = vmatpush1.xpose.msra.mxu0 0.0
        %1399 = vmatprep.subr.mxu0 0.0
        %1400 = vmatpush1.xpose.msra.mxu0 0.0
        %1401 = vmatprep.subr.mxu0 0.0
        %1402 = vmatpush1.xpose.msra.mxu0 0.0
        %1403 = vmatprep.subr.mxu0 0.0
        %1404 = vmatpush1.xpose.msra.mxu0 0.0
        %1405 = vmatprep.subr.mxu0 0.0
        %1406 = vmatpush1.xpose.msra.mxu0 0.0
        %1407 = vmatprep.subr.mxu0 0.0
        %1408 = vmatpush1.xpose.msra.mxu0 0.0
        %1409 = vmatprep.subr.mxu0 0.0
        %1410 = vmatpush1.xpose.msra.mxu0 0.0
        %1411 = vmatprep.subr.mxu0 0.0
        %1412 = vmatpush1.xpose.msra.mxu0 0.0
        %1413 = vmatprep.subr.mxu0 0.0
        %1414 = vmatpush1.xpose.msra.mxu0 0.0
        %1415 = vmatprep.subr.mxu0 0.0
        %1416 = vmatpush1.xpose.msra.mxu0 0.0
        %1417 = vmatprep.subr.mxu0 0.0
        %1418 = vmatpush1.xpose.msra.mxu0 0.0
        %1419 = vmatprep.subr.mxu0 0.0
        %1420 = vmatpush1.xpose.msra.mxu0 0.0
        %1421 = vmatprep.subr.mxu0 0.0
        %1422 = vmatpush1.xpose.msra.mxu0 0.0
        %1423 = vmatprep.subr.mxu0 0.0
        %1424 = vmatpush1.xpose.msra.mxu0 0.0
        %1425 = vmatprep.subr.mxu0 0.0
        %1426 = vmatpush1.xpose.msra.mxu0 0.0
        %1427 = vmatprep.subr.mxu0 0.0
        %1428 = vmatpush1.xpose.msra.mxu0 0.0
        %1429 = vmatprep.subr.mxu0 0.0
        %1430 = vmatpush1.xpose.msra.mxu0 0.0
        %1431 = vmatprep.subr.mxu0 0.0
        %1432 = vmatpush1.xpose.msra.mxu0 0.0
        %1433 = vmatprep.subr.mxu0 0.0
        %1434 = vmatpush1.xpose.msra.mxu0 0.0
        %1435 = vmatprep.subr.mxu0 0.0
        %1436 = vmatpush1.xpose.msra.mxu0 0.0
        %1437 = vmatprep.subr.mxu0 0.0
        %1438 = vmatpush1.xpose.msra.mxu0 0.0
        %1439 = vmatprep.subr.mxu0 0.0
        %1440 = vmatpush1.xpose.msra.mxu0 0.0
        %1441 = vmatprep.subr.mxu0 0.0
        %1442 = vmatpush1.xpose.msra.mxu0 0.0
        %1443 = vmatprep.subr.mxu0 0.0
        %1444 = vmatpush1.xpose.msra.mxu0 0.0
        %1445 = vmatprep.subr.mxu0 0.0
        %1446 = vmatpush1.xpose.msra.mxu0 0.0
        %1447 = vmatprep.subr.mxu0 0.0
        %1448 = vmatpush1.xpose.msra.mxu0 0.0
        %1449 = vmatprep.subr.mxu0 0.0
        %1450 = vmatpush1.xpose.msra.mxu0 0.0
        %1451 = vmatprep.subr.mxu0 0.0
        %1452 = vmatpush1.xpose.msra.mxu0 0.0
        %1453 = vmatprep.subr.mxu0 0.0
        %1454 = vmatpush1.xpose.msra.mxu0 0.0
        %1455 = vmatprep.subr.mxu0 0.0
        %1456 = vmatpush1.xpose.msra.mxu0 0.0
        %1457 = vmatprep.mubr.f32.mxu0 0.0
        %1458 = vmatmul.mubr.f32.gmra.mrb[0].mxu0 %v1388
        %v1459 = vpop.f32.mrb[0].mxu0
        %v1460 = vadd.f32 0.0, %v1459
        %v1461 = vpop.f32.mrb[0].mxu0
        %1462 = vdwg.mxu0
        %v1463 = vsel %vm1237, %v1232, 0
        %v1466 = vsel %vm1237, %v1236, 0
        %1468 = vmatprep.subr.mxu0 0.0
        %1469 = vmatpush1.xpose.msra.mxu0 %v1466
        %1470 = vmatprep.subr.mxu0 0.0
        %1471 = vmatpush1.xpose.msra.mxu0 0.0
        %1472 = vmatprep.subr.mxu0 0.0
        %1473 = vmatpush1.xpose.msra.mxu0 0.0
        %1474 = vmatprep.subr.mxu0 0.0
        %1475 = vmatpush1.xpose.msra.mxu0 0.0
        %1476 = vmatprep.subr.mxu0 0.0
        %1477 = vmatpush1.xpose.msra.mxu0 0.0
        %1478 = vmatprep.subr.mxu0 0.0
        %1479 = vmatpush1.xpose.msra.mxu0 0.0
        %1480 = vmatprep.subr.mxu0 0.0
        %1481 = vmatpush1.xpose.msra.mxu0 0.0
        %1482 = vmatprep.subr.mxu0 0.0
        %1483 = vmatpush1.xpose.msra.mxu0 0.0
        %1484 = vmatprep.subr.mxu0 0.0
        %1485 = vmatpush1.xpose.msra.mxu0 0.0
        %1486 = vmatprep.subr.mxu0 0.0
        %1487 = vmatpush1.xpose.msra.mxu0 0.0
        %1488 = vmatprep.subr.mxu0 0.0
        %1489 = vmatpush1.xpose.msra.mxu0 0.0
        %1490 = vmatprep.subr.mxu0 0.0
        %1491 = vmatpush1.xpose.msra.mxu0 0.0
        %1492 = vmatprep.subr.mxu0 0.0
        %1493 = vmatpush1.xpose.msra.mxu0 0.0
        %1494 = vmatprep.subr.mxu0 0.0
        %1495 = vmatpush1.xpose.msra.mxu0 0.0
        %1496 = vmatprep.subr.mxu0 0.0
        %1497 = vmatpush1.xpose.msra.mxu0 0.0
        %1498 = vmatprep.subr.mxu0 0.0
        %1499 = vmatpush1.xpose.msra.mxu0 0.0
        %1500 = vmatprep.subr.mxu0 0.0
        %1501 = vmatpush1.xpose.msra.mxu0 0.0
        %1502 = vmatprep.subr.mxu0 0.0
        %1503 = vmatpush1.xpose.msra.mxu0 0.0
        %1504 = vmatprep.subr.mxu0 0.0
        %1505 = vmatpush1.xpose.msra.mxu0 0.0
        %1506 = vmatprep.subr.mxu0 0.0
        %1507 = vmatpush1.xpose.msra.mxu0 0.0
        %1508 = vmatprep.subr.mxu0 0.0
        %1509 = vmatpush1.xpose.msra.mxu0 0.0
        %1510 = vmatprep.subr.mxu0 0.0
        %1511 = vmatpush1.xpose.msra.mxu0 0.0
        %1512 = vmatprep.subr.mxu0 0.0
        %1513 = vmatpush1.xpose.msra.mxu0 0.0
        %1514 = vmatprep.subr.mxu0 0.0
        %1515 = vmatpush1.xpose.msra.mxu0 0.0
        %1516 = vmatprep.subr.mxu0 0.0
        %1517 = vmatpush1.xpose.msra.mxu0 0.0
        %1518 = vmatprep.subr.mxu0 0.0
        %1519 = vmatpush1.xpose.msra.mxu0 0.0
        %1520 = vmatprep.subr.mxu0 0.0
        %1521 = vmatpush1.xpose.msra.mxu0 0.0
        %1522 = vmatprep.subr.mxu0 0.0
        %1523 = vmatpush1.xpose.msra.mxu0 0.0
        %1524 = vmatprep.subr.mxu0 0.0
        %1525 = vmatpush1.xpose.msra.mxu0 0.0
        %1526 = vmatprep.subr.mxu0 0.0
        %1527 = vmatpush1.xpose.msra.mxu0 0.0
        %1528 = vmatprep.subr.mxu0 0.0
        %1529 = vmatpush1.xpose.msra.mxu0 0.0
        %1530 = vmatprep.subr.mxu0 0.0
        %1531 = vmatpush1.xpose.msra.mxu0 0.0
        %1532 = vmatprep.mubr.f32.mxu0 0.0
        %1533 = vmatmul.mubr.f32.gmra.mrb[0].mxu0 %v1463
        %v1534 = vpop.f32.mrb[0].mxu0
        %v1535 = vadd.f32 0.0, %v1534
        %v1536 = vpop.f32.mrb[0].mxu0
        %1537 = vdwg.mxu0
        %v1538 = vmul.f32 %v1310, 0.35355338
        %v1539 = vmul.f32 %v1385, 0.35355338
        %v1540 = vmul.f32 %v1460, 0.35355338
        %v1541 = vmul.f32 %v1535, 0.35355338
        %v1542 = vlaneseq
        %v1543 = vshrl.u32 %v1542, 7
        %v1544 = vstv %s1101
        %v1545 = vadd.s32 %v1544, %v1543
        %v1546 = vlaneseq
        %v1547 = vand.u32 %v1546, 127
        %vm1548 = vcmp.ge.s32.totalorder %v1545, %v1547
        %v1549 = vsel %vm1548, %v1538, -1e+10
        %v1550 = vsel %vm1548, %v1539, -1e+10
        %v1551 = vsel %vm1548, %v1540, -1e+10
        %v1552 = vsel %vm1548, %v1541, -1e+10
        %v1553 = vsel %vm1237, %v1549, -inf
        %1554 = vmax.xlane.f32.xlu0 %v1553
        %v1555 = vpop.xlane.xlu0 %1554
        %v1556 = vsel %vm1237, %v1550, -inf
        %1557 = vmax.xlane.f32.xlu0 %v1556
        %v1558 = vpop.xlane.xlu0 %1557
        %v1559 = vsel %vm1237, %v1551, -inf
        %1560 = vmax.xlane.f32.xlu0 %v1559
        %v1561 = vpop.xlane.xlu0 %1560
        %v1562 = vsel %vm1237, %v1552, -inf
        %1563 = vmax.xlane.f32.xlu0 %v1562
        %v1564 = vpop.xlane.xlu0 %1563
        %v1565 = vsub.f32 %v1549, %v1555
        %v1566 = vsub.f32 %v1550, %v1558
        %v1567 = vsub.f32 %v1551, %v1561
        %v1568 = vsub.f32 %v1552, %v1564
        %v1569 = vmul.f32 %v1565, 1.442695
        %v1570 = vpow.pop %v1569
        %v1571 = vmul.f32 %v1566, 1.442695
        %v1572 = vpow.pop %v1571
        %v1573 = vmul.f32 %v1567, 1.442695
        %v1574 = vpow.pop %v1573
        %v1575 = vmul.f32 %v1568, 1.442695
        %v1576 = vpow.pop %v1575
        %v1577 = vsel %vm1237, %v1570, 0.0
        %1578 = vadd.xlane.f32.xlu0 %v1577
        %v1579 = vpop.xlane.xlu0 %1578
        %v1580 = vsel %vm1237, %v1572, 0.0
        %1581 = vadd.xlane.f32.xlu0 %v1580
        %v1582 = vpop.xlane.xlu0 %1581
        %v1583 = vsel %vm1237, %v1574, 0.0
        %1584 = vadd.xlane.f32.xlu0 %v1583
        %v1585 = vpop.xlane.xlu0 %1584
        %v1586 = vsel %vm1237, %v1576, 0.0
        %1587 = vadd.xlane.f32.xlu0 %v1586
        %v1588 = vpop.xlane.xlu0 %1587
        %v1589 = vrcp.pop %v1579
        %v1590 = vrcp.pop %v1582
        %v1591 = vrcp.pop %v1585
        %v1592 = vrcp.pop %v1588
        %v1593 = vmul.f32 %v1570, %v1589
        %v1594 = vmul.f32 %v1572, %v1590
        %v1595 = vmul.f32 %v1574, %v1591
        %v1596 = vmul.f32 %v1576, %v1592
        %v1597 = vld [vmem:[#allocation3] sm:$0xff]
        %v1598 = vld [vmem:[#allocation3 + $0x8] sm:$0xff]
        %v1599 = vld [vmem:[#allocation3 + $0x10] sm:$0xff]
        %v1600 = vld [vmem:[#allocation3 + $0x18] sm:$0xff]
        %v1602 = vsel %vm1237, %v1593, 0
        %1604 = vmatprep.subr.mxu0 0.0
        %1605 = vmatpush1.msra.mxu0 %v1597
        %1606 = vmatprep.subr.mxu0 0.0
        %1607 = vmatpush1.msra.mxu0 0.0
        %1608 = vmatprep.subr.mxu0 0.0
        %1609 = vmatpush1.msra.mxu0 0.0
        %1610 = vmatprep.subr.mxu0 0.0
        %1611 = vmatpush1.msra.mxu0 0.0
        %1612 = vmatprep.subr.mxu0 0.0
        %1613 = vmatpush1.msra.mxu0 0.0
        %1614 = vmatprep.subr.mxu0 0.0
        %1615 = vmatpush1.msra.mxu0 0.0
        %1616 = vmatprep.subr.mxu0 0.0
        %1617 = vmatpush1.msra.mxu0 0.0
        %1618 = vmatprep.subr.mxu0 0.0
        %1619 = vmatpush1.msra.mxu0 0.0
        %1620 = vmatprep.subr.mxu0 0.0
        %1621 = vmatpush1.msra.mxu0 0.0
        %1622 = vmatprep.subr.mxu0 0.0
        %1623 = vmatpush1.msra.mxu0 0.0
        %1624 = vmatprep.subr.mxu0 0.0
        %1625 = vmatpush1.msra.mxu0 0.0
        %1626 = vmatprep.subr.mxu0 0.0
        %1627 = vmatpush1.msra.mxu0 0.0
        %1628 = vmatprep.subr.mxu0 0.0
        %1629 = vmatpush1.msra.mxu0 0.0
        %1630 = vmatprep.subr.mxu0 0.0
        %1631 = vmatpush1.msra.mxu0 0.0
        %1632 = vmatprep.subr.mxu0 0.0
        %1633 = vmatpush1.msra.mxu0 0.0
        %1634 = vmatprep.subr.mxu0 0.0
        %1635 = vmatpush1.msra.mxu0 0.0
        %1636 = vmatprep.subr.mxu0 0.0
        %1637 = vmatpush1.msra.mxu0 0.0
        %1638 = vmatprep.subr.mxu0 0.0
        %1639 = vmatpush1.msra.mxu0 0.0
        %1640 = vmatprep.subr.mxu0 0.0
        %1641 = vmatpush1.msra.mxu0 0.0
        %1642 = vmatprep.subr.mxu0 0.0
        %1643 = vmatpush1.msra.mxu0 0.0
        %1644 = vmatprep.subr.mxu0 0.0
        %1645 = vmatpush1.msra.mxu0 0.0
        %1646 = vmatprep.subr.mxu0 0.0
        %1647 = vmatpush1.msra.mxu0 0.0
        %1648 = vmatprep.subr.mxu0 0.0
        %1649 = vmatpush1.msra.mxu0 0.0
        %1650 = vmatprep.subr.mxu0 0.0
        %1651 = vmatpush1.msra.mxu0 0.0
        %1652 = vmatprep.subr.mxu0 0.0
        %1653 = vmatpush1.msra.mxu0 0.0
        %1654 = vmatprep.subr.mxu0 0.0
        %1655 = vmatpush1.msra.mxu0 0.0
        %1656 = vmatprep.subr.mxu0 0.0
        %1657 = vmatpush1.msra.mxu0 0.0
        %1658 = vmatprep.subr.mxu0 0.0
        %1659 = vmatpush1.msra.mxu0 0.0
        %1660 = vmatprep.subr.mxu0 0.0
        %1661 = vmatpush1.msra.mxu0 0.0
        %1662 = vmatprep.subr.mxu0 0.0
        %1663 = vmatpush1.msra.mxu0 0.0
        %1664 = vmatprep.subr.mxu0 0.0
        %1665 = vmatpush1.msra.mxu0 0.0
        %1666 = vmatprep.subr.mxu0 0.0
        %1667 = vmatpush1.msra.mxu0 0.0
        %1668 = vmatprep.mubr.f32.mxu0 0.0
        %1669 = vmatmul.mubr.f32.gmra.mrb[0].mxu0 %v1602
        %v1670 = vpop.f32.mrb[0].mxu0
        %v1671 = vadd.f32 0.0, %v1670
        %v1672 = vpop.f32.mrb[0].mxu0
        %1673 = vdwg.mxu0
        %v1675 = vsel %vm1237, %v1594, 0
        %1677 = vmatprep.subr.mxu0 0.0
        %1678 = vmatpush1.msra.mxu0 %v1598
        %1679 = vmatprep.subr.mxu0 0.0
        %1680 = vmatpush1.msra.mxu0 0.0
        %1681 = vmatprep.subr.mxu0 0.0
        %1682 = vmatpush1.msra.mxu0 0.0
        %1683 = vmatprep.subr.mxu0 0.0
        %1684 = vmatpush1.msra.mxu0 0.0
        %1685 = vmatprep.subr.mxu0 0.0
        %1686 = vmatpush1.msra.mxu0 0.0
        %1687 = vmatprep.subr.mxu0 0.0
        %1688 = vmatpush1.msra.mxu0 0.0
        %1689 = vmatprep.subr.mxu0 0.0
        %1690 = vmatpush1.msra.mxu0 0.0
        %1691 = vmatprep.subr.mxu0 0.0
        %1692 = vmatpush1.msra.mxu0 0.0
        %1693 = vmatprep.subr.mxu0 0.0
        %1694 = vmatpush1.msra.mxu0 0.0
        %1695 = vmatprep.subr.mxu0 0.0
        %1696 = vmatpush1.msra.mxu0 0.0
        %1697 = vmatprep.subr.mxu0 0.0
        %1698 = vmatpush1.msra.mxu0 0.0
        %1699 = vmatprep.subr.mxu0 0.0
        %1700 = vmatpush1.msra.mxu0 0.0
        %1701 = vmatprep.subr.mxu0 0.0
        %1702 = vmatpush1.msra.mxu0 0.0
        %1703 = vmatprep.subr.mxu0 0.0
        %1704 = vmatpush1.msra.mxu0 0.0
        %1705 = vmatprep.subr.mxu0 0.0
        %1706 = vmatpush1.msra.mxu0 0.0
        %1707 = vmatprep.subr.mxu0 0.0
        %1708 = vmatpush1.msra.mxu0 0.0
        %1709 = vmatprep.subr.mxu0 0.0
        %1710 = vmatpush1.msra.mxu0 0.0
        %1711 = vmatprep.subr.mxu0 0.0
        %1712 = vmatpush1.msra.mxu0 0.0
        %1713 = vmatprep.subr.mxu0 0.0
        %1714 = vmatpush1.msra.mxu0 0.0
        %1715 = vmatprep.subr.mxu0 0.0
        %1716 = vmatpush1.msra.mxu0 0.0
        %1717 = vmatprep.subr.mxu0 0.0
        %1718 = vmatpush1.msra.mxu0 0.0
        %1719 = vmatprep.subr.mxu0 0.0
        %1720 = vmatpush1.msra.mxu0 0.0
        %1721 = vmatprep.subr.mxu0 0.0
        %1722 = vmatpush1.msra.mxu0 0.0
        %1723 = vmatprep.subr.mxu0 0.0
        %1724 = vmatpush1.msra.mxu0 0.0
        %1725 = vmatprep.subr.mxu0 0.0
        %1726 = vmatpush1.msra.mxu0 0.0
        %1727 = vmatprep.subr.mxu0 0.0
        %1728 = vmatpush1.msra.mxu0 0.0
        %1729 = vmatprep.subr.mxu0 0.0
        %1730 = vmatpush1.msra.mxu0 0.0
        %1731 = vmatprep.subr.mxu0 0.0
        %1732 = vmatpush1.msra.mxu0 0.0
        %1733 = vmatprep.subr.mxu0 0.0
        %1734 = vmatpush1.msra.mxu0 0.0
        %1735 = vmatprep.subr.mxu0 0.0
        %1736 = vmatpush1.msra.mxu0 0.0
        %1737 = vmatprep.subr.mxu0 0.0
        %1738 = vmatpush1.msra.mxu0 0.0
        %1739 = vmatprep.subr.mxu0 0.0
        %1740 = vmatpush1.msra.mxu0 0.0
        %1741 = vmatprep.mubr.f32.mxu0 0.0
        %1742 = vmatmul.mubr.f32.gmra.mrb[0].mxu0 %v1675
        %v1743 = vpop.f32.mrb[0].mxu0
        %v1744 = vadd.f32 0.0, %v1743
        %v1745 = vpop.f32.mrb[0].mxu0
        %1746 = vdwg.mxu0
        %v1748 = vsel %vm1237, %v1595, 0
        %1750 = vmatprep.subr.mxu0 0.0
        %1751 = vmatpush1.msra.mxu0 %v1599
        %1752 = vmatprep.subr.mxu0 0.0
        %1753 = vmatpush1.msra.mxu0 0.0
        %1754 = vmatprep.subr.mxu0 0.0
        %1755 = vmatpush1.msra.mxu0 0.0
        %1756 = vmatprep.subr.mxu0 0.0
        %1757 = vmatpush1.msra.mxu0 0.0
        %1758 = vmatprep.subr.mxu0 0.0
        %1759 = vmatpush1.msra.mxu0 0.0
        %1760 = vmatprep.subr.mxu0 0.0
        %1761 = vmatpush1.msra.mxu0 0.0
        %1762 = vmatprep.subr.mxu0 0.0
        %1763 = vmatpush1.msra.mxu0 0.0
        %1764 = vmatprep.subr.mxu0 0.0
        %1765 = vmatpush1.msra.mxu0 0.0
        %1766 = vmatprep.subr.mxu0 0.0
        %1767 = vmatpush1.msra.mxu0 0.0
        %1768 = vmatprep.subr.mxu0 0.0
        %1769 = vmatpush1.msra.mxu0 0.0
        %1770 = vmatprep.subr.mxu0 0.0
        %1771 = vmatpush1.msra.mxu0 0.0
        %1772 = vmatprep.subr.mxu0 0.0
        %1773 = vmatpush1.msra.mxu0 0.0
        %1774 = vmatprep.subr.mxu0 0.0
        %1775 = vmatpush1.msra.mxu0 0.0
        %1776 = vmatprep.subr.mxu0 0.0
        %1777 = vmatpush1.msra.mxu0 0.0
        %1778 = vmatprep.subr.mxu0 0.0
        %1779 = vmatpush1.msra.mxu0 0.0
        %1780 = vmatprep.subr.mxu0 0.0
        %1781 = vmatpush1.msra.mxu0 0.0
        %1782 = vmatprep.subr.mxu0 0.0
        %1783 = vmatpush1.msra.mxu0 0.0
        %1784 = vmatprep.subr.mxu0 0.0
        %1785 = vmatpush1.msra.mxu0 0.0
        %1786 = vmatprep.subr.mxu0 0.0
        %1787 = vmatpush1.msra.mxu0 0.0
        %1788 = vmatprep.subr.mxu0 0.0
        %1789 = vmatpush1.msra.mxu0 0.0
        %1790 = vmatprep.subr.mxu0 0.0
        %1791 = vmatpush1.msra.mxu0 0.0
        %1792 = vmatprep.subr.mxu0 0.0
        %1793 = vmatpush1.msra.mxu0 0.0
        %1794 = vmatprep.subr.mxu0 0.0
        %1795 = vmatpush1.msra.mxu0 0.0
        %1796 = vmatprep.subr.mxu0 0.0
        %1797 = vmatpush1.msra.mxu0 0.0
        %1798 = vmatprep.subr.mxu0 0.0
        %1799 = vmatpush1.msra.mxu0 0.0
        %1800 = vmatprep.subr.mxu0 0.0
        %1801 = vmatpush1.msra.mxu0 0.0
        %1802 = vmatprep.subr.mxu0 0.0
        %1803 = vmatpush1.msra.mxu0 0.0
        %1804 = vmatprep.subr.mxu0 0.0
        %1805 = vmatpush1.msra.mxu0 0.0
        %1806 = vmatprep.subr.mxu0 0.0
        %1807 = vmatpush1.msra.mxu0 0.0
        %1808 = vmatprep.subr.mxu0 0.0
        %1809 = vmatpush1.msra.mxu0 0.0
        %1810 = vmatprep.subr.mxu0 0.0
        %1811 = vmatpush1.msra.mxu0 0.0
        %1812 = vmatprep.subr.mxu0 0.0
        %1813 = vmatpush1.msra.mxu0 0.0
        %1814 = vmatprep.mubr.f32.mxu0 0.0
        %1815 = vmatmul.mubr.f32.gmra.mrb[0].mxu0 %v1748
        %v1816 = vpop.f32.mrb[0].mxu0
        %v1817 = vadd.f32 0.0, %v1816
        %v1818 = vpop.f32.mrb[0].mxu0
        %1819 = vdwg.mxu0
        %v1821 = vsel %vm1237, %v1596, 0
        %1823 = vmatprep.subr.mxu0 0.0
        %1824 = vmatpush1.msra.mxu0 %v1600
        %1825 = vmatprep.subr.mxu0 0.0
        %1826 = vmatpush1.msra.mxu0 0.0
        %1827 = vmatprep.subr.mxu0 0.0
        %1828 = vmatpush1.msra.mxu0 0.0
        %1829 = vmatprep.subr.mxu0 0.0
        %1830 = vmatpush1.msra.mxu0 0.0
        %1831 = vmatprep.subr.mxu0 0.0
        %1832 = vmatpush1.msra.mxu0 0.0
        %1833 = vmatprep.subr.mxu0 0.0
        %1834 = vmatpush1.msra.mxu0 0.0
        %1835 = vmatprep.subr.mxu0 0.0
        %1836 = vmatpush1.msra.mxu0 0.0
        %1837 = vmatprep.subr.mxu0 0.0
        %1838 = vmatpush1.msra.mxu0 0.0
        %1839 = vmatprep.subr.mxu0 0.0
        %1840 = vmatpush1.msra.mxu0 0.0
        %1841 = vmatprep.subr.mxu0 0.0
        %1842 = vmatpush1.msra.mxu0 0.0
        %1843 = vmatprep.subr.mxu0 0.0
        %1844 = vmatpush1.msra.mxu0 0.0
        %1845 = vmatprep.subr.mxu0 0.0
        %1846 = vmatpush1.msra.mxu0 0.0
        %1847 = vmatprep.subr.mxu0 0.0
        %1848 = vmatpush1.msra.mxu0 0.0
        %1849 = vmatprep.subr.mxu0 0.0
        %1850 = vmatpush1.msra.mxu0 0.0
        %1851 = vmatprep.subr.mxu0 0.0
        %1852 = vmatpush1.msra.mxu0 0.0
        %1853 = vmatprep.subr.mxu0 0.0
        %1854 = vmatpush1.msra.mxu0 0.0
        %1855 = vmatprep.subr.mxu0 0.0
        %1856 = vmatpush1.msra.mxu0 0.0
        %1857 = vmatprep.subr.mxu0 0.0
        %1858 = vmatpush1.msra.mxu0 0.0
        %1859 = vmatprep.subr.mxu0 0.0
        %1860 = vmatpush1.msra.mxu0 0.0
        %1861 = vmatprep.subr.mxu0 0.0
        %1862 = vmatpush1.msra.mxu0 0.0
        %1863 = vmatprep.subr.mxu0 0.0
        %1864 = vmatpush1.msra.mxu0 0.0
        %1865 = vmatprep.subr.mxu0 0.0
        %1866 = vmatpush1.msra.mxu0 0.0
        %1867 = vmatprep.subr.mxu0 0.0
        %1868 = vmatpush1.msra.mxu0 0.0
        %1869 = vmatprep.subr.mxu0 0.0
        %1870 = vmatpush1.msra.mxu0 0.0
        %1871 = vmatprep.subr.mxu0 0.0
        %1872 = vmatpush1.msra.mxu0 0.0
        %1873 = vmatprep.subr.mxu0 0.0
        %1874 = vmatpush1.msra.mxu0 0.0
        %1875 = vmatprep.subr.mxu0 0.0
        %1876 = vmatpush1.msra.mxu0 0.0
        %1877 = vmatprep.subr.mxu0 0.0
        %1878 = vmatpush1.msra.mxu0 0.0
        %1879 = vmatprep.subr.mxu0 0.0
        %1880 = vmatpush1.msra.mxu0 0.0
        %1881 = vmatprep.subr.mxu0 0.0
        %1882 = vmatpush1.msra.mxu0 0.0
        %1883 = vmatprep.subr.mxu0 0.0
        %1884 = vmatpush1.msra.mxu0 0.0
        %1885 = vmatprep.subr.mxu0 0.0
        %1886 = vmatpush1.msra.mxu0 0.0
        %1887 = vmatprep.mubr.f32.mxu0 0.0
        %1888 = vmatmul.mubr.f32.gmra.mrb[0].mxu0 %v1821
        %v1889 = vpop.f32.mrb[0].mxu0
        %v1890 = vadd.f32 0.0, %v1889
        %v1891 = vpop.f32.mrb[0].mxu0
        %1892 = vdwg.mxu0
        %1894 = vrot.lane.b32.xlu0 %v1744, 8
        %v1895 = vpop.permute.xlu0 %1894
        %1898 = vrot.lane.b32.xlu0 %v1817, 16
        %v1899 = vpop.permute.xlu0 %1898
        %1902 = vrot.lane.b32.xlu0 %v1890, 24
        %v1903 = vpop.permute.xlu0 %1902
        %v1905 = vsel %vm1237, %v1671, %v1895
        %vm1906 = vcmask 130048
        %v1907 = vsel %vm1906, %v1905, %v1899
        %vm1908 = vcmask 195584
        %v1909 = vsel %vm1908, %v1907, %v1903
        %v1910 = vld [vmem:[#allocation19] sm:$0xff]
        %v1911 = vld [vmem:[#allocation19 + $0x8] sm:$0xff]
        %v1912 = vld [vmem:[#allocation19 + $0x10] sm:$0xff]
        %v1913 = vld [vmem:[#allocation19 + $0x18] sm:$0xff]
        %v1914 = vld [vmem:[#allocation21] sm:$0x1]
        %v1916 = vlaneseq
        %v1917 = vshrl.u32 %v1916, 7
        %v1918 = vsub.s32 0, %v1917
        %v1919 = vrot.slane %v1914, %v1918
        %v1922 = vsel %vm1106, %v1909, 0
        %1924 = vmatprep.subr.mxu0 0.0
        %1925 = vmatpush1.msra.mxu0 %v1910
        %1926 = vmatprep.subr.mxu0 0.0
        %1927 = vmatpush1.msra.mxu0 %v1911
        %1928 = vmatprep.subr.mxu0 0.0
        %1929 = vmatpush1.msra.mxu0 %v1912
        %1930 = vmatprep.subr.mxu0 0.0
        %1931 = vmatpush1.msra.mxu0 %v1913
        %1932 = vmatprep.subr.mxu0 0.0
        %1933 = vmatpush1.msra.mxu0 0.0
        %1934 = vmatprep.subr.mxu0 0.0
        %1935 = vmatpush1.msra.mxu0 0.0
        %1936 = vmatprep.subr.mxu0 0.0
        %1937 = vmatpush1.msra.mxu0 0.0
        %1938 = vmatprep.subr.mxu0 0.0
        %1939 = vmatpush1.msra.mxu0 0.0
        %1940 = vmatprep.subr.mxu0 0.0
        %1941 = vmatpush1.msra.mxu0 0.0
        %1942 = vmatprep.subr.mxu0 0.0
        %1943 = vmatpush1.msra.mxu0 0.0
        %1944 = vmatprep.subr.mxu0 0.0
        %1945 = vmatpush1.msra.mxu0 0.0
        %1946 = vmatprep.subr.mxu0 0.0
        %1947 = vmatpush1.msra.mxu0 0.0
        %1948 = vmatprep.subr.mxu0 0.0
        %1949 = vmatpush1.msra.mxu0 0.0
        %1950 = vmatprep.subr.mxu0 0.0
        %1951 = vmatpush1.msra.mxu0 0.0
        %1952 = vmatprep.subr.mxu0 0.0
        %1953 = vmatpush1.msra.mxu0 0.0
        %1954 = vmatprep.subr.mxu0 0.0
        %1955 = vmatpush1.msra.mxu0 0.0
        %1956 = vmatprep.subr.mxu0 0.0
        %1957 = vmatpush1.msra.mxu0 0.0
        %1958 = vmatprep.subr.mxu0 0.0
        %1959 = vmatpush1.msra.mxu0 0.0
        %1960 = vmatprep.subr.mxu0 0.0
        %1961 = vmatpush1.msra.mxu0 0.0
        %1962 = vmatprep.subr.mxu0 0.0
        %1963 = vmatpush1.msra.mxu0 0.0
        %1964 = vmatprep.subr.mxu0 0.0
        %1965 = vmatpush1.msra.mxu0 0.0
        %1966 = vmatprep.subr.mxu0 0.0
        %1967 = vmatpush1.msra.mxu0 0.0
        %1968 = vmatprep.subr.mxu0 0.0
        %1969 = vmatpush1.msra.mxu0 0.0
        %1970 = vmatprep.subr.mxu0 0.0
        %1971 = vmatpush1.msra.mxu0 0.0
        %1972 = vmatprep.subr.mxu0 0.0
        %1973 = vmatpush1.msra.mxu0 0.0
        %1974 = vmatprep.subr.mxu0 0.0
        %1975 = vmatpush1.msra.mxu0 0.0
        %1976 = vmatprep.subr.mxu0 0.0
        %1977 = vmatpush1.msra.mxu0 0.0
        %1978 = vmatprep.subr.mxu0 0.0
        %1979 = vmatpush1.msra.mxu0 0.0
        %1980 = vmatprep.subr.mxu0 0.0
        %1981 = vmatpush1.msra.mxu0 0.0
        %1982 = vmatprep.subr.mxu0 0.0
        %1983 = vmatpush1.msra.mxu0 0.0
        %1984 = vmatprep.subr.mxu0 0.0
        %1985 = vmatpush1.msra.mxu0 0.0
        %1986 = vmatprep.subr.mxu0 0.0
        %1987 = vmatpush1.msra.mxu0 0.0
        %1988 = vmatprep.mubr.f32.mxu0 0.0
        %1989 = vmatmul.mubr.f32.gmra.mrb[0].mxu0 %v1922
        %v1990 = vpop.f32.mrb[0].mxu0
        %v1991 = vadd.f32 %v1919, %v1990
        %v1992 = vpop.f32.mrb[0].mxu0
        %1993 = vdwg.mxu0
        %v1994 = vadd.f32 %v1103, %v1991
        %v1995 = vld [vmem:[#allocation22] sm:$0x1]
        %v1996 = vld [vmem:[#allocation24] sm:$0x1]
        %v1997 = vsel %vm1106, %v1994, 0.0
        %1998 = vadd.xlane.f32.xlu0 %v1997
        %v1999 = vpop.xlane.xlu0 %1998
        %v2000 = vmul.f32 %v1999, %v1110
        %v2001 = vsub.f32 %v1994, %v2000
        %v2002 = vmul.f32 %v2001, %v2001
        %v2003 = vsel %vm1106, %v2002, 0.0
        %2004 = vadd.xlane.f32.xlu0 %v2003
        %v2005 = vpop.xlane.xlu0 %2004
        %v2006 = vmul.f32 %v2005, %v1110
        %v2007 = vadd.f32 %v2006, 1e-05
        %v2008 = vrsqrt.pop %v2007
        %v2009 = vmul.f32 %v2007, %v2008
        %vm2010 = vcmp.eq.f32.partialorder %v2007, inf
        %v2011 = vsel %vm2010, %v2007, %v2009
        %vm2012 = vcmp.eq.f32.partialorder %v2007, 0.0
        %v2013 = vand.u32 %v2007, 2147483648
        %v2014 = vsel %vm2012, %v2013, %v2011
        %v2015 = vrcp.pop %v2014
        %v2016 = vmul.f32 %v2001, %v2015
        %v2018 = vlaneseq
        %v2019 = vshrl.u32 %v2018, 7
        %v2020 = vsub.s32 0, %v2019
        %v2021 = vrot.slane %v1995, %v2020
        %v2023 = vmul.f32 %v2021, %v2016
        %v2025 = vlaneseq
        %v2026 = vshrl.u32 %v2025, 7
        %v2027 = vsub.s32 0, %v2026
        %v2028 = vrot.slane %v1996, %v2027
        %v2030 = vadd.f32 %v2023, %v2028
        %v2031 = vld [vmem:[#allocation25] sm:$0xff]
        %v2032 = vld [vmem:[#allocation25 + $0x8] sm:$0xff]
        %v2033 = vld [vmem:[#allocation25 + $0x10] sm:$0xff]
        %v2034 = vld [vmem:[#allocation25 + $0x18] sm:$0xff]
        %v2035 = vld [vmem:[#allocation27] sm:$0x1]
        %v2037 = vlaneseq
        %v2038 = vshrl.u32 %v2037, 7
        %v2039 = vsub.s32 0, %v2038
        %v2040 = vrot.slane %v2035, %v2039
        %v2043 = vsel %vm1106, %v2030, 0
        %2045 = vmatprep.subr.mxu0 0.0
        %2046 = vmatpush1.msra.mxu0 %v2031
        %2047 = vmatprep.subr.mxu0 0.0
        %2048 = vmatpush1.msra.mxu0 %v2032
        %2049 = vmatprep.subr.mxu0 0.0
        %2050 = vmatpush1.msra.mxu0 %v2033
        %2051 = vmatprep.subr.mxu0 0.0
        %2052 = vmatpush1.msra.mxu0 %v2034
        %2053 = vmatprep.subr.mxu0 0.0
        %2054 = vmatpush1.msra.mxu0 0.0
        %2055 = vmatprep.subr.mxu0 0.0
        %2056 = vmatpush1.msra.mxu0 0.0
        %2057 = vmatprep.subr.mxu0 0.0
        %2058 = vmatpush1.msra.mxu0 0.0
        %2059 = vmatprep.subr.mxu0 0.0
        %2060 = vmatpush1.msra.mxu0 0.0
        %2061 = vmatprep.subr.mxu0 0.0
        %2062 = vmatpush1.msra.mxu0 0.0
        %2063 = vmatprep.subr.mxu0 0.0
        %2064 = vmatpush1.msra.mxu0 0.0
        %2065 = vmatprep.subr.mxu0 0.0
        %2066 = vmatpush1.msra.mxu0 0.0
        %2067 = vmatprep.subr.mxu0 0.0
        %2068 = vmatpush1.msra.mxu0 0.0
        %2069 = vmatprep.subr.mxu0 0.0
        %2070 = vmatpush1.msra.mxu0 0.0
        %2071 = vmatprep.subr.mxu0 0.0
        %2072 = vmatpush1.msra.mxu0 0.0
        %2073 = vmatprep.subr.mxu0 0.0
        %2074 = vmatpush1.msra.mxu0 0.0
        %2075 = vmatprep.subr.mxu0 0.0
        %2076 = vmatpush1.msra.mxu0 0.0
        %2077 = vmatprep.subr.mxu0 0.0
        %2078 = vmatpush1.msra.mxu0 0.0
        %2079 = vmatprep.subr.mxu0 0.0
        %2080 = vmatpush1.msra.mxu0 0.0
        %2081 = vmatprep.subr.mxu0 0.0
        %2082 = vmatpush1.msra.mxu0 0.0
        %2083 = vmatprep.subr.mxu0 0.0
        %2084 = vmatpush1.msra.mxu0 0.0
        %2085 = vmatprep.subr.mxu0 0.0
        %2086 = vmatpush1.msra.mxu0 0.0
        %2087 = vmatprep.subr.mxu0 0.0
        %2088 = vmatpush1.msra.mxu0 0.0
        %2089 = vmatprep.subr.mxu0 0.0
        %2090 = vmatpush1.msra.mxu0 0.0
        %2091 = vmatprep.subr.mxu0 0.0
        %2092 = vmatpush1.msra.mxu0 0.0
        %2093 = vmatprep.subr.mxu0 0.0
        %2094 = vmatpush1.msra.mxu0 0.0
        %2095 = vmatprep.subr.mxu0 0.0
        %2096 = vmatpush1.msra.mxu0 0.0
        %2097 = vmatprep.subr.mxu0 0.0
        %2098 = vmatpush1.msra.mxu0 0.0
        %2099 = vmatprep.subr.mxu0 0.0
        %2100 = vmatpush1.msra.mxu0 0.0
        %2101 = vmatprep.subr.mxu0 0.0
        %2102 = vmatpush1.msra.mxu0 0.0
        %2103 = vmatprep.subr.mxu0 0.0
        %2104 = vmatpush1.msra.mxu0 0.0
        %2105 = vmatprep.subr.mxu0 0.0
        %2106 = vmatpush1.msra.mxu0 0.0
        %2107 = vmatprep.subr.mxu0 0.0
        %2108 = vmatpush1.msra.mxu0 0.0
        %2109 = vmatprep.mubr.f32.mxu0 0.0
        %2110 = vmatmul.mubr.f32.gmra.mrb[0].mxu0 %v2043
        %v2111 = vpop.f32.mrb[0].mxu0
        %v2112 = vadd.f32 %v2040, %v2111
        %v2113 = vpop.f32.mrb[0].mxu0
        %2114 = vdwg.mxu0
        %v2115 = vmul.f32 %v2112, 0.5
        %v2116 = vmul.f32 %v2112, %v2112
        %v2117 = vmul.f32 %v2112, %v2116
        %v2118 = vmul.f32 %v2117, 0.044715
        %v2119 = vadd.f32 %v2112, %v2118
        %v2120 = vmul.f32 %v2119, 0.7978846
        %v2121 = vtanh.pop %v2120
        %v2122 = vadd.f32 %v2121, 1.0
        %v2123 = vmul.f32 %v2115, %v2122
        %v2124 = vld [vmem:[#allocation28] sm:$0xff]
        %v2125 = vld [vmem:[#allocation28 + $0x8] sm:$0xff]
        %v2126 = vld [vmem:[#allocation28 + $0x10] sm:$0xff]
        %v2127 = vld [vmem:[#allocation28 + $0x18] sm:$0xff]
        %v2128 = vld [vmem:[#allocation28 + $0x20] sm:$0xff]
        %v2129 = vld [vmem:[#allocation28 + $0x28] sm:$0xff]
        %v2130 = vld [vmem:[#allocation28 + $0x30] sm:$0xff]
        %v2131 = vld [vmem:[#allocation28 + $0x38] sm:$0xff]
        %v2132 = vld [vmem:[#allocation28 + $0x40] sm:$0xff]
        %v2133 = vld [vmem:[#allocation28 + $0x48] sm:$0xff]
        %v2134 = vld [vmem:[#allocation28 + $0x50] sm:$0xff]
        %v2135 = vld [vmem:[#allocation28 + $0x58] sm:$0xff]
        %v2136 = vld [vmem:[#allocation28 + $0x60] sm:$0xff]
        %v2137 = vld [vmem:[#allocation28 + $0x68] sm:$0xff]
        %v2138 = vld [vmem:[#allocation28 + $0x70] sm:$0xff]
        %v2139 = vld [vmem:[#allocation28 + $0x78] sm:$0xff]
        %v2140 = vld [vmem:[#allocation30] sm:$0x1]
        %v2142 = vlaneseq
        %v2143 = vshrl.u32 %v2142, 7
        %v2144 = vsub.s32 0, %v2143
        %v2145 = vrot.slane %v2140, %v2144
        %2147 = vmatprep.subr.mxu0 0.0
        %2148 = vmatpush1.msra.mxu0 %v2124
        %2149 = vmatprep.subr.mxu0 0.0
        %2150 = vmatpush1.msra.mxu0 %v2125
        %2151 = vmatprep.subr.mxu0 0.0
        %2152 = vmatpush1.msra.mxu0 %v2126
        %2153 = vmatprep.subr.mxu0 0.0
        %2154 = vmatpush1.msra.mxu0 %v2127
        %2155 = vmatprep.subr.mxu0 0.0
        %2156 = vmatpush1.msra.mxu0 %v2128
        %2157 = vmatprep.subr.mxu0 0.0
        %2158 = vmatpush1.msra.mxu0 %v2129
        %2159 = vmatprep.subr.mxu0 0.0
        %2160 = vmatpush1.msra.mxu0 %v2130
        %2161 = vmatprep.subr.mxu0 0.0
        %2162 = vmatpush1.msra.mxu0 %v2131
        %2163 = vmatprep.subr.mxu0 0.0
        %2164 = vmatpush1.msra.mxu0 %v2132
        %2165 = vmatprep.subr.mxu0 0.0
        %2166 = vmatpush1.msra.mxu0 %v2133
        %2167 = vmatprep.subr.mxu0 0.0
        %2168 = vmatpush1.msra.mxu0 %v2134
        %2169 = vmatprep.subr.mxu0 0.0
        %2170 = vmatpush1.msra.mxu0 %v2135
        %2171 = vmatprep.subr.mxu0 0.0
        %2172 = vmatpush1.msra.mxu0 %v2136
        %2173 = vmatprep.subr.mxu0 0.0
        %2174 = vmatpush1.msra.mxu0 %v2137
        %2175 = vmatprep.subr.mxu0 0.0
        %2176 = vmatpush1.msra.mxu0 %v2138
        %2177 = vmatprep.subr.mxu0 0.0
        %2178 = vmatpush1.msra.mxu0 %v2139
        %2179 = vmatprep.subr.mxu0 0.0
        %2180 = vmatpush1.msra.mxu0 0.0
        %2181 = vmatprep.subr.mxu0 0.0
        %2182 = vmatpush1.msra.mxu0 0.0
        %2183 = vmatprep.subr.mxu0 0.0
        %2184 = vmatpush1.msra.mxu0 0.0
        %2185 = vmatprep.subr.mxu0 0.0
        %2186 = vmatpush1.msra.mxu0 0.0
        %2187 = vmatprep.subr.mxu0 0.0
        %2188 = vmatpush1.msra.mxu0 0.0
        %2189 = vmatprep.subr.mxu0 0.0
        %2190 = vmatpush1.msra.mxu0 0.0
        %2191 = vmatprep.subr.mxu0 0.0
        %2192 = vmatpush1.msra.mxu0 0.0
        %2193 = vmatprep.subr.mxu0 0.0
        %2194 = vmatpush1.msra.mxu0 0.0
        %2195 = vmatprep.subr.mxu0 0.0
        %2196 = vmatpush1.msra.mxu0 0.0
        %2197 = vmatprep.subr.mxu0 0.0
        %2198 = vmatpush1.msra.mxu0 0.0
        %2199 = vmatprep.subr.mxu0 0.0
        %2200 = vmatpush1.msra.mxu0 0.0
        %2201 = vmatprep.subr.mxu0 0.0
        %2202 = vmatpush1.msra.mxu0 0.0
        %2203 = vmatprep.subr.mxu0 0.0
        %2204 = vmatpush1.msra.mxu0 0.0
        %2205 = vmatprep.subr.mxu0 0.0
        %2206 = vmatpush1.msra.mxu0 0.0
        %2207 = vmatprep.subr.mxu0 0.0
        %2208 = vmatpush1.msra.mxu0 0.0
        %2209 = vmatprep.subr.mxu0 0.0
        %2210 = vmatpush1.msra.mxu0 0.0
        %2211 = vmatprep.mubr.f32.mxu0 0.0
        %2212 = vmatmul.mubr.f32.gmra.mrb[0].mxu0 %v2123
        %v2213 = vpop.f32.mrb[0].mxu0
        %v2214 = vadd.f32 %v2145, %v2213
        %v2215 = vpop.f32.mrb[0].mxu0
        %2216 = vdwg.mxu0
        %v2217 = vadd.f32 %v1994, %v2214
        %2218 = vst.msk [vmem:[%s847] sm:$0xff] %vm1106, %v2217
        %s2219 = sand.u32 %s432, 1
        %s2220 = scalar_lea.sflag [#allocation6], %s2219
        %s2221 = sand.u32 %s432, 1
        %s2222 = smul.addr %s2221, 8
        %s2223 = scalar_lea.vmem [#allocation31], %s2222
        %s2224 = sand.u32 %s48, 1
        %s2225 = scalar_lea.sflag [#allocation33], %s2224
        %s2226 = sand.u32 %s458, 1
        %s2227 = smul.addr %s2226, 8
        %s2228 = scalar_lea.vmem [#allocation32], %s2227
        %s2229 = sand.u32 %s48, 1
        %s2230 = scalar_lea.sflag [#allocation33], %s2229
        %s2231 = sand.u32 %s484, 1
        %s2232 = smul.addr %s2231, 8
        %s2233 = scalar_lea.vmem [#allocation34], %s2232
        // Predicated region
        $region161: #{tpu_custom_call.1} parent=87 // pred_check
          %p2234 = pneg %p442
        $region162: #{tpu_custom_call.1} parent=87 // pred_check_branch
          %2236 = sbr.rel (%p2234) target = $region164
        $region163: #{tpu_custom_call.1} parent=87 // pred_region
          %s2238 = ssub.s32 128, 128
          %2239 = vsyncadd %s2220, %s2238
          %s2240 = sadd.s32 %s53, %s52
          %s2241 = smul.addr %s2240, 128
          %s2242 = scalar_lea.hbm %s17, %s2241
          %s2244 = sshll.u32 %s2223, 4
          %s2245 = int_to_ptr.vmem [resolvable:$true] %s2244
          %2247 = dma.vmem_to_hbm [thread:$0]  %s2245, 128, %s2242, %s2220
        $region164: #{tpu_custom_call.1} parent=87 // pred_fallthru
          _
        // Predicated region
        $region165: #{tpu_custom_call.1} parent=87 // pred_check
          %p2248 = pneg %p468
        $region166: #{tpu_custom_call.1} parent=87 // pred_check_branch
          %2250 = sbr.rel (%p2248) target = $region168
        $region167: #{tpu_custom_call.1} parent=87 // pred_region
          %s2252 = ssub.s32 128, 128
          %2253 = vsyncadd %s2225, %s2252
          %s2254 = smul.addr %s52, 128
          %s2255 = scalar_lea.hbm %s18, %s2254
          %s2257 = sshll.u32 %s2228, 4
          %s2258 = int_to_ptr.vmem [resolvable:$true] %s2257
          %2260 = dma.vmem_to_hbm [thread:$0]  %s2258, 128, %s2255, %s2225
        $region168: #{tpu_custom_call.1} parent=87 // pred_fallthru
          _
        // Predicated region
        $region169: #{tpu_custom_call.1} parent=87 // pred_check
          %p2261 = pneg %p494
        $region170: #{tpu_custom_call.1} parent=87 // pred_check_branch
          %2263 = sbr.rel (%p2261) target = $region172
        $region171: #{tpu_custom_call.1} parent=87 // pred_region
          %s2265 = ssub.s32 128, 128
          %2266 = vsyncadd %s2230, %s2265
          %s2267 = smul.addr %s52, 128
          %s2268 = scalar_lea.hbm %s19, %s2267
          %s2270 = sshll.u32 %s2233, 4
          %s2271 = int_to_ptr.vmem [resolvable:$true] %s2270
          %2273 = dma.vmem_to_hbm [thread:$0]  %s2271, 128, %s2268, %s2230
        $region172: #{tpu_custom_call.1} parent=87 // pred_fallthru
          _
      $region88: #{tpu_custom_call.1} parent=5 // pred_fallthru
        _
      %p2274 = scmp.le.s32.totalorder 2, %s43
      // Predicated region
      $region173: #{tpu_custom_call.1} parent=5 // pred_check
        %p2275 = pneg %p2274
      $region174: #{tpu_custom_call.1} parent=5 // pred_check_branch
        %2277 = sbr.rel (%p2275) target = $region176
      $region175: #{tpu_custom_call.1} parent=5 // pred_region
        %s2278 = ssub.s32 %s43, 2
        // Predicated region
        $region177: #{tpu_custom_call.1} parent=175 // pred_check
          %p2279 = pneg %p448
        $region178: #{tpu_custom_call.1} parent=175 // pred_check_branch
          %2281 = sbr.rel (%p2279) target = $region180
        $region179: #{tpu_custom_call.1} parent=175 // pred_region
          %s2282 = sand.u32 %s433, 1
          %s2283 = scalar_lea.sflag [#allocation6], %s2282
          %s2284 = sand.u32 %s433, 1
          %s2285 = smul.addr %s2284, 8
          %s2286 = scalar_lea.vmem [#allocation31], %s2285
          %2287 = dma.done %s2283, 128
        $region180: #{tpu_custom_call.1} parent=175 // pred_fallthru
          _
        // Predicated region
        $region181: #{tpu_custom_call.1} parent=175 // pred_check
          %p2288 = pneg %p474
        $region182: #{tpu_custom_call.1} parent=175 // pred_check_branch
          %2290 = sbr.rel (%p2288) target = $region184
        $region183: #{tpu_custom_call.1} parent=175 // pred_region
          %s2291 = sand.u32 %s49, 1
          %s2292 = scalar_lea.sflag [#allocation33], %s2291
          %s2293 = sand.u32 %s459, 1
          %s2294 = smul.addr %s2293, 8
          %s2295 = scalar_lea.vmem [#allocation32], %s2294
          %2296 = dma.done %s2292, 128
        $region184: #{tpu_custom_call.1} parent=175 // pred_fallthru
          _
        // Predicated region
        $region185: #{tpu_custom_call.1} parent=175 // pred_check
          %p2297 = pneg %p500
        $region186: #{tpu_custom_call.1} parent=175 // pred_check_branch
          %2299 = sbr.rel (%p2297) target = $region188
        $region187: #{tpu_custom_call.1} parent=175 // pred_region
          %s2300 = sand.u32 %s49, 1
          %s2301 = scalar_lea.sflag [#allocation33], %s2300
          %s2302 = sand.u32 %s485, 1
          %s2303 = smul.addr %s2302, 8
          %s2304 = scalar_lea.vmem [#allocation34], %s2303
          %2305 = dma.done %s2301, 128
        $region188: #{tpu_custom_call.1} parent=175 // pred_fallthru
          _
      $region176: #{tpu_custom_call.1} parent=5 // pred_fallthru
        _
    $region6: #{tpu_custom_call.1} parent=1 // loop_footer
      %s47 = sadd.s32 1, %s43
    $region7: #{tpu_custom_call.1} parent=1 // loop_footer_branch
      %42 = sbr.rel target = $region3
    $region8: #{tpu_custom_call.1} parent=1 // loop_exit
      _
    %2306 = vsyncpa [#allocation5], 1
    %s2307 = scalar_lea.sflag [#allocation5], 1
    %2308 = vsyncpa %s2307, 1
    %2309 = vsyncpa [#allocation8], 1
    %2310 = vsyncpa [#allocation11], 1
    %2311 = vsyncpa [#allocation14], 1
    %2312 = vsyncpa [#allocation17], 1
    %2313 = vsyncpa [#allocation20], 1
    %2314 = vsyncpa [#allocation23], 1
    %2315 = vsyncpa [#allocation26], 1
    %2316 = vsyncpa [#allocation29], 1
    %2317 = vsyncpa [#allocation6], 1
    %s2318 = scalar_lea.sflag [#allocation6], 1
    %2319 = vsyncpa %s2318, 1
    %2320 = vsyncpa [#allocation33], 1
    %s2321 = scalar_lea.sflag [#allocation33], 1
    %2322 = vsyncpa %s2321, 1

</llo_original>
